<compile_context>
chip_gen: v6e
topology: v6e:2x2x1
jax: 0.10.0
libtpu: 0.0.40
codegen_flags: <defaults>
</compile_context>

<pallas_src>
import jax
import jax.numpy as jnp
from jax import lax
from jax.experimental import pallas as pl
from jax.experimental.pallas import tpu as pltpu


def _round8(n):
    return ((n + 7) // 8) * 8


def _packed_layout(input_dim, hidden_dim):
    """Row offsets (all 8-sublane aligned) of the packed parameter slab."""
    off = {}
    r = 0
    off["wih0"] = r; r += _round8(input_dim)   # (I, 4H)
    off["b0"] = r;   r += 8                    # (1, 4H)
    off["b1"] = r;   r += 8                    # (1, 4H)
    off["whh1"] = r; r += _round8(hidden_dim)  # (H, 4H)
    off["wlin"] = r; r += _round8(hidden_dim)  # (H, 4H)  (w_lin zero-padded to 4H cols)
    off["blin"] = r; r += 8                    # (1, 4H)  (b_lin zero-padded to 4H cols)
    return off, r


def _lstm_head_kernel(x_ref, wmrg_ref, packed_ref, out_ref):
    T, B, I = x_ref.shape
    H = wmrg_ref.shape[0]          # wmrg is (H, 8H)
    G = 4 * H
    O = out_ref.shape[1]
    off, _ = _packed_layout(I, H)

    # Parameters (loaded once, all static 8-aligned slices of the packed slab).
    wmrg = wmrg_ref[...]                                    # (H, 8H) = [W_hh0 | W_ih1]
    whh1 = packed_ref[off["whh1"]:off["whh1"] + H, :]       # (H, 4H)
    b0 = packed_ref[off["b0"]:off["b0"] + 1, :]             # (1, 4H)
    # Broadcast b1 once (JAX does not CSE broadcast_in_dim; keep out of the loop).
    b1 = jnp.broadcast_to(packed_ref[off["b1"]:off["b1"] + 1, :], (B, G))

    # Hoisted layer-0 input projection (+ bias) for all T steps, kept in vregs.
    if I == 1:
        wih0 = packed_ref[off["wih0"]:off["wih0"] + 1, :]   # (1, 4H)
        xg = x_ref[...] * wih0 + b0                         # (T, B, 4H), pure VPU
    else:
        wih0 = packed_ref[off["wih0"]:off["wih0"] + I, :]   # (I, 4H)
        xg = lax.dot_general(
            x_ref[...], wih0,
            dimension_numbers=(((2,), (0,)), ((), ())),
            preferred_element_type=jnp.float32) + b0

    def gates_to_hc(gates, c):
        # Gate columns are pre-permuted to [i, f, o, g]: one sigmoid over a
        # contiguous 3H block, one tanh over the last H block (one EUP push each).
        sig = jax.nn.sigmoid(gates[:, :3 * H])
        i = sig[:, :H]
        f = sig[:, H:2 * H]
        o = sig[:, 2 * H:3 * H]
        g = jnp.tanh(gates[:, 3 * H:])
        c_new = f * c + i * g
        h_new = o * jnp.tanh(c_new)
        return h_new, c_new

    zeros_bh = jnp.zeros((B, H), jnp.float32)
    zeros_bg = jnp.zeros((B, G), jnp.float32)
    c0 = zeros_bh
    h1 = zeros_bh
    c1 = zeros_bh
    rec0 = zeros_bg   # h0(t-1) @ W_hh0, carried from the previous step (h0(-1)=0)
    rec1 = zeros_bg   # h1(t-1) @ W_hh1, computed off the dependent chain (h1(-1)=0)

    # Static, fully unrolled time loop (T is small); scheduler overlaps the
    # off-chain h1@W_hh1 product with layer-0 of the next step.
    for t in range(T):
        # Layer 0: hoisted input projection + carried recurrent partial.
        h0, c0 = gates_to_hc(xg[t] + rec0, c0)

        # One MXU push for both products sharing h0(t) as LHS:
        #   cols [0:4H)  -> h0(t) @ W_hh0 (layer-0 recurrence for step t+1)
        #   cols [4H:8H) -> h0(t) @ W_ih1 (layer-1 input part for step t)
        big = jnp.dot(h0, wmrg, preferred_element_type=jnp.float32)   # (B, 8H)
        rec0 = big[:, :G]

        # Layer 1: rec1 = h1(t-1) @ W_hh1 was produced off-chain last iteration.
        # TODO(synk): on v7x, expressing this as dot+dot into one accumulator
        #             would let Mosaic use MRB in-place accumulate (single pop).
        h1, c1 = gates_to_hc(big[:, G:] + rec1 + b1, c1)

        # Off-chain product for the next step (not needed after the last step).
        if t + 1 < T:
            rec1 = jnp.dot(h1, whh1, preferred_element_type=jnp.float32)

    # linear(out[:, -1, :]) on the last hidden state of the top LSTM layer.
    # w_lin/b_lin are zero-padded to 4H columns; compute wide, slice to O.
    w_lin = packed_ref[off["wlin"]:off["wlin"] + H, :]      # (H, 4H)
    b_lin = packed_ref[off["blin"]:off["blin"] + 1, :]      # (1, 4H)
    y = jnp.dot(h1, w_lin, preferred_element_type=jnp.float32) + b_lin
    out_ref[...] = y[:, :O]


def prepare_params(params):
    """One-time parameter preprocessing. Call once and reuse the result —
    the forward call then only does the x transpose + pallas_call."""
    I = params["w_ih0"].shape[0]
    H = params["w_hh0"].shape[0]
    O = params["w_lin"].shape[1]
    G = 4 * H
    assert O <= G, "output_dim must fit in the packed 4H-wide slab"

    def perm_gates(w):
        # PyTorch gate order [i, f, g, o] -> kernel order [i, f, o, g].
        return jnp.concatenate(
            [w[:, :2 * H], w[:, 3 * H:4 * H], w[:, 2 * H:3 * H]], axis=1)

    w_ih0 = perm_gates(params["w_ih0"])   # (I, 4H)
    w_hh0 = perm_gates(params["w_hh0"])   # (H, 4H)
    b0 = perm_gates(params["b0"])         # (1, 4H)
    w_ih1 = perm_gates(params["w_ih1"])   # (H, 4H)
    w_hh1 = perm_gates(params["w_hh1"])   # (H, 4H)
    b1 = perm_gates(params["b1"])         # (1, 4H)

    # Merge the two products that share h0(t) as LHS into one (H, 8H) RHS.
    w_merged = jnp.concatenate([w_hh0, w_ih1], axis=1)

    # Pack everything else into one (rows, 4H) slab with 8-aligned sections
    # (2 parameter DMAs total instead of 8).
    off, total_rows = _packed_layout(I, H)
    packed = jnp.zeros((total_rows, G), jnp.float32)
    packed = packed.at[off["wih0"]:off["wih0"] + I, :].set(w_ih0)
    packed = packed.at[off["b0"]:off["b0"] + 1, :].set(b0)
    packed = packed.at[off["b1"]:off["b1"] + 1, :].set(b1)
    packed = packed.at[off["whh1"]:off["whh1"] + H, :].set(w_hh1)
    packed = packed.at[off["wlin"]:off["wlin"] + H, :O].set(params["w_lin"])
    packed = packed.at[off["blin"]:off["blin"] + 1, :O].set(params["b_lin"])

    return {"w_merged": w_merged, "packed": packed, "output_dim": O}


def covid19_estimator_forward(x, prepped):
    """x: (B, T, I) float32 (batch-first, like PyTorch). Returns (B, output_dim)."""
    B, T, I = x.shape
    O = prepped["output_dim"]
    x_tm = jnp.transpose(x, (1, 0, 2))  # (T, B, I) time-major for the kernel

    vmem = pl.BlockSpec(memory_space=pltpu.MemorySpace.VMEM)
    out = pl.pallas_call(
        _lstm_head_kernel,
        out_shape=jax.ShapeDtypeStruct((B, O), jnp.float32),
        in_specs=[vmem, vmem, vmem],
        out_specs=vmem,
    )(x_tm, prepped["w_merged"], prepped["packed"])
    return out


def reference_forward(x, params):
    """Pure-JAX reference of the same forward pass (PyTorch gate order i,f,g,o)."""
    B, T, I = x.shape
    H = params["w_hh0"].shape[0]

    def cell(x_t, h, c, wih, whh, b):
        gates = x_t @ wih + h @ whh + b
        i = jax.nn.sigmoid(gates[:, 0:H])
        f = jax.nn.sigmoid(gates[:, H:2 * H])
        g = jnp.tanh(gates[:, 2 * H:3 * H])
        o = jax.nn.sigmoid(gates[:, 3 * H:4 * H])
        c = f * c + i * g
        h = o * jnp.tanh(c)
        return h, c

    h0 = c0 = h1 = c1 = jnp.zeros((B, H), jnp.float32)
    for t in range(T):
        h0, c0 = cell(x[:, t, :], h0, c0, params["w_ih0"], params["w_hh0"], params["b0"])
        h1, c1 = cell(h0, h1, c1, params["w_ih1"], params["w_hh1"], params["b1"])
    return h1 @ params["w_lin"] + params["b_lin"]


def init_params(key, input_dim, hidden_dim, output_dim):
    """Deterministic init mimicking PyTorch's U(-1/sqrt(H), 1/sqrt(H)).

    Weights are stored pre-transposed to (in_features, 4H) with PyTorch gate
    order i, f, g, o; prepare_params() permutes/fuses/packs them for the kernel.
    """
    k = 1.0 / jnp.sqrt(jnp.float32(hidden_dim))
    keys = jax.random.split(key, 12)

    def u(rng, shape):
        return jax.random.uniform(rng, shape, jnp.float32, -k, k)

    w_ih0 = u(keys[0], (input_dim, 4 * hidden_dim))
    w_hh0 = u(keys[1], (hidden_dim, 4 * hidden_dim))
    b0 = (u(keys[2], (1, 4 * hidden_dim)) + u(keys[3], (1, 4 * hidden_dim)))
    w_ih1 = u(keys[4], (hidden_dim, 4 * hidden_dim))
    w_hh1 = u(keys[5], (hidden_dim, 4 * hidden_dim))
    b1 = (u(keys[6], (1, 4 * hidden_dim)) + u(keys[7], (1, 4 * hidden_dim)))
    w_lin = u(keys[8], (hidden_dim, output_dim))
    b_lin = u(keys[9], (1, output_dim))

    return {
        "w_ih0": w_ih0, "w_hh0": w_hh0, "b0": b0,
        "w_ih1": w_ih1, "w_hh1": w_hh1, "b1": b1,
        "w_lin": w_lin, "b_lin": b_lin,
    }


if __name__ == "__main__":
    # Small shapes consistent with the module: input_dim=1, output_dim=1,
    # layer_dim=2 (two stacked LSTM layers), hidden=32, batch=2, seq=8.
    B, T, I, H, O = 2, 8, 1, 32, 1

    root = jax.random.PRNGKey(0)
    k_x, k_p = jax.random.split(root)
    x = jax.random.normal(k_x, (B, T, I), jnp.float32)
    params = init_params(k_p, I, H, O)

    prepped = prepare_params(params)  # one-time prep; reuse across forward calls

    out = jax.block_until_ready(covid19_estimator_forward(x, prepped))
    ref = jax.block_until_ready(reference_forward(x, params))

    assert out.shape == (B, O), out.shape
    assert jnp.allclose(out, ref, atol=1e-4, rtol=1e-4), (out, ref)
    print("KERNEL_OK")
</pallas_src>

<mosaic_0001>
module attributes {stable_mosaic.version = 11 : i64} {
  func.func @_lstm_head_kernel(%arg0: memref<8x2x1xf32, #tpu.memory_space<vmem>>, %arg1: memref<32x256xf32, #tpu.memory_space<vmem>>, %arg2: memref<96x128xf32, #tpu.memory_space<vmem>>, %arg3: memref<2x1xf32, #tpu.memory_space<vmem>>) attributes {dimension_semantics = [], scalar_prefetch = 0 : i64, scratch_operands = 0 : i64, tpu.core_type = #tpu.core_type<tc>} {
    %c0 = arith.constant 0 : index
    %c0_0 = arith.constant 0 : index
    %0 = vector.load %arg1[%c0, %c0_0] : memref<32x256xf32, #tpu.memory_space<vmem>>, vector<32x256xf32>
    %c24 = arith.constant 24 : index
    %c0_1 = arith.constant 0 : index
    %1 = vector.load %arg2[%c24, %c0_1] : memref<96x128xf32, #tpu.memory_space<vmem>>, vector<32x128xf32>
    %c8 = arith.constant 8 : index
    %c0_2 = arith.constant 0 : index
    %2 = vector.load %arg2[%c8, %c0_2] : memref<96x128xf32, #tpu.memory_space<vmem>>, vector<1x128xf32>
    %c16 = arith.constant 16 : index
    %c0_3 = arith.constant 0 : index
    %3 = vector.load %arg2[%c16, %c0_3] : memref<96x128xf32, #tpu.memory_space<vmem>>, vector<1x128xf32>
    %4 = vector.shape_cast %3 : vector<1x128xf32> to vector<1x128xf32>
    %5 = vector.broadcast %4 : vector<1x128xf32> to vector<2x128xf32>
    %c0_4 = arith.constant 0 : index
    %c0_5 = arith.constant 0 : index
    %6 = vector.load %arg2[%c0_4, %c0_5] : memref<96x128xf32, #tpu.memory_space<vmem>>, vector<1x128xf32>
    %c0_6 = arith.constant 0 : index
    %c0_7 = arith.constant 0 : index
    %c0_8 = arith.constant 0 : index
    %7 = vector.load %arg0[%c0_6, %c0_7, %c0_8] : memref<8x2x1xf32, #tpu.memory_space<vmem>>, vector<8x2x1xf32>
    %8 = vector.shape_cast %6 : vector<1x128xf32> to vector<1x1x128xf32>
    %9 = vector.broadcast %7 : vector<8x2x1xf32> to vector<8x2x128xf32>
    %10 = vector.broadcast %8 : vector<1x1x128xf32> to vector<8x2x128xf32>
    %11 = arith.mulf %9, %10 : vector<8x2x128xf32>
    %12 = vector.shape_cast %2 : vector<1x128xf32> to vector<1x1x128xf32>
    %13 = vector.broadcast %12 : vector<1x1x128xf32> to vector<8x2x128xf32>
    %14 = arith.addf %11, %13 : vector<8x2x128xf32>
    %cst = arith.constant 0.000000e+00 : f32
    %15 = vector.broadcast %cst : f32 to vector<2x32xf32>
    %cst_9 = arith.constant 0.000000e+00 : f32
    %16 = vector.broadcast %cst_9 : f32 to vector<2x128xf32>
    %17 = vector.extract_strided_slice %14 {offsets = [0, 0, 0], sizes = [1, 2, 128], strides = [1, 1, 1]} : vector<8x2x128xf32> to vector<1x2x128xf32>
    %18 = vector.shape_cast %17 : vector<1x2x128xf32> to vector<2x128xf32>
    %19 = arith.addf %18, %16 : vector<2x128xf32>
    %20 = vector.extract_strided_slice %19 {offsets = [0, 0], sizes = [2, 96], strides = [1, 1]} : vector<2x128xf32> to vector<2x96xf32>
    %21 = arith.negf %20 : vector<2x96xf32>
    %22 = math.exp %21 : vector<2x96xf32>
    %cst_10 = arith.constant 1.000000e+00 : f32
    %23 = vector.broadcast %cst_10 : f32 to vector<2x96xf32>
    %24 = arith.addf %23, %22 : vector<2x96xf32>
    %25 = arith.divf %23, %24 : vector<2x96xf32>
    %26 = vector.extract_strided_slice %25 {offsets = [0, 0], sizes = [2, 32], strides = [1, 1]} : vector<2x96xf32> to vector<2x32xf32>
    %27 = vector.extract_strided_slice %25 {offsets = [0, 32], sizes = [2, 32], strides = [1, 1]} : vector<2x96xf32> to vector<2x32xf32>
    %28 = vector.extract_strided_slice %25 {offsets = [0, 64], sizes = [2, 32], strides = [1, 1]} : vector<2x96xf32> to vector<2x32xf32>
    %29 = vector.extract_strided_slice %19 {offsets = [0, 96], sizes = [2, 32], strides = [1, 1]} : vector<2x128xf32> to vector<2x32xf32>
    %30 = math.tanh %29 : vector<2x32xf32>
    %31 = arith.mulf %27, %15 : vector<2x32xf32>
    %32 = arith.mulf %26, %30 : vector<2x32xf32>
    %33 = arith.addf %31, %32 : vector<2x32xf32>
    %34 = math.tanh %33 : vector<2x32xf32>
    %35 = arith.mulf %28, %34 : vector<2x32xf32>
    %cst_11 = arith.constant dense<0.000000e+00> : vector<2x256xf32>
    %36 = tpu.matmul %35, %0, %cst_11 {dimension_numbers = #tpu.dot_dimension_numbers<[1], [0], [0], [1], [0, 0, 1, 1], [], []>} : vector<2x32xf32>, vector<32x256xf32>, vector<2x256xf32> -> vector<2x256xf32>
    %37 = vector.extract_strided_slice %36 {offsets = [0, 0], sizes = [2, 128], strides = [1, 1]} : vector<2x256xf32> to vector<2x128xf32>
    %38 = vector.extract_strided_slice %36 {offsets = [0, 128], sizes = [2, 128], strides = [1, 1]} : vector<2x256xf32> to vector<2x128xf32>
    %39 = arith.addf %38, %16 : vector<2x128xf32>
    %40 = arith.addf %39, %5 : vector<2x128xf32>
    %41 = vector.extract_strided_slice %40 {offsets = [0, 0], sizes = [2, 96], strides = [1, 1]} : vector<2x128xf32> to vector<2x96xf32>
    %42 = arith.negf %41 : vector<2x96xf32>
    %43 = math.exp %42 : vector<2x96xf32>
    %cst_12 = arith.constant 1.000000e+00 : f32
    %44 = vector.broadcast %cst_12 : f32 to vector<2x96xf32>
    %45 = arith.addf %44, %43 : vector<2x96xf32>
    %46 = arith.divf %44, %45 : vector<2x96xf32>
    %47 = vector.extract_strided_slice %46 {offsets = [0, 0], sizes = [2, 32], strides = [1, 1]} : vector<2x96xf32> to vector<2x32xf32>
    %48 = vector.extract_strided_slice %46 {offsets = [0, 32], sizes = [2, 32], strides = [1, 1]} : vector<2x96xf32> to vector<2x32xf32>
    %49 = vector.extract_strided_slice %46 {offsets = [0, 64], sizes = [2, 32], strides = [1, 1]} : vector<2x96xf32> to vector<2x32xf32>
    %50 = vector.extract_strided_slice %40 {offsets = [0, 96], sizes = [2, 32], strides = [1, 1]} : vector<2x128xf32> to vector<2x32xf32>
    %51 = math.tanh %50 : vector<2x32xf32>
    %52 = arith.mulf %48, %15 : vector<2x32xf32>
    %53 = arith.mulf %47, %51 : vector<2x32xf32>
    %54 = arith.addf %52, %53 : vector<2x32xf32>
    %55 = math.tanh %54 : vector<2x32xf32>
    %56 = arith.mulf %49, %55 : vector<2x32xf32>
    %cst_13 = arith.constant dense<0.000000e+00> : vector<2x128xf32>
    %57 = tpu.matmul %56, %1, %cst_13 {dimension_numbers = #tpu.dot_dimension_numbers<[1], [0], [0], [1], [0, 0, 1, 1], [], []>} : vector<2x32xf32>, vector<32x128xf32>, vector<2x128xf32> -> vector<2x128xf32>
    %58 = vector.extract_strided_slice %14 {offsets = [1, 0, 0], sizes = [1, 2, 128], strides = [1, 1, 1]} : vector<8x2x128xf32> to vector<1x2x128xf32>
    %59 = vector.shape_cast %58 : vector<1x2x128xf32> to vector<2x128xf32>
    %60 = arith.addf %59, %37 : vector<2x128xf32>
    %61 = vector.extract_strided_slice %60 {offsets = [0, 0], sizes = [2, 96], strides = [1, 1]} : vector<2x128xf32> to vector<2x96xf32>
    %62 = arith.negf %61 : vector<2x96xf32>
    %63 = math.exp %62 : vector<2x96xf32>
    %cst_14 = arith.constant 1.000000e+00 : f32
    %64 = vector.broadcast %cst_14 : f32 to vector<2x96xf32>
    %65 = arith.addf %64, %63 : vector<2x96xf32>
    %66 = arith.divf %64, %65 : vector<2x96xf32>
    %67 = vector.extract_strided_slice %66 {offsets = [0, 0], sizes = [2, 32], strides = [1, 1]} : vector<2x96xf32> to vector<2x32xf32>
    %68 = vector.extract_strided_slice %66 {offsets = [0, 32], sizes = [2, 32], strides = [1, 1]} : vector<2x96xf32> to vector<2x32xf32>
    %69 = vector.extract_strided_slice %66 {offsets = [0, 64], sizes = [2, 32], strides = [1, 1]} : vector<2x96xf32> to vector<2x32xf32>
    %70 = vector.extract_strided_slice %60 {offsets = [0, 96], sizes = [2, 32], strides = [1, 1]} : vector<2x128xf32> to vector<2x32xf32>
    %71 = math.tanh %70 : vector<2x32xf32>
    %72 = arith.mulf %68, %33 : vector<2x32xf32>
    %73 = arith.mulf %67, %71 : vector<2x32xf32>
    %74 = arith.addf %72, %73 : vector<2x32xf32>
    %75 = math.tanh %74 : vector<2x32xf32>
    %76 = arith.mulf %69, %75 : vector<2x32xf32>
    %cst_15 = arith.constant dense<0.000000e+00> : vector<2x256xf32>
    %77 = tpu.matmul %76, %0, %cst_15 {dimension_numbers = #tpu.dot_dimension_numbers<[1], [0], [0], [1], [0, 0, 1, 1], [], []>} : vector<2x32xf32>, vector<32x256xf32>, vector<2x256xf32> -> vector<2x256xf32>
    %78 = vector.extract_strided_slice %77 {offsets = [0, 0], sizes = [2, 128], strides = [1, 1]} : vector<2x256xf32> to vector<2x128xf32>
    %79 = vector.extract_strided_slice %77 {offsets = [0, 128], sizes = [2, 128], strides = [1, 1]} : vector<2x256xf32> to vector<2x128xf32>
    %80 = arith.addf %79, %57 : vector<2x128xf32>
    %81 = arith.addf %80, %5 : vector<2x128xf32>
    %82 = vector.extract_strided_slice %81 {offsets = [0, 0], sizes = [2, 96], strides = [1, 1]} : vector<2x128xf32> to vector<2x96xf32>
    %83 = arith.negf %82 : vector<2x96xf32>
    %84 = math.exp %83 : vector<2x96xf32>
    %cst_16 = arith.constant 1.000000e+00 : f32
    %85 = vector.broadcast %cst_16 : f32 to vector<2x96xf32>
    %86 = arith.addf %85, %84 : vector<2x96xf32>
    %87 = arith.divf %85, %86 : vector<2x96xf32>
    %88 = vector.extract_strided_slice %87 {offsets = [0, 0], sizes = [2, 32], strides = [1, 1]} : vector<2x96xf32> to vector<2x32xf32>
    %89 = vector.extract_strided_slice %87 {offsets = [0, 32], sizes = [2, 32], strides = [1, 1]} : vector<2x96xf32> to vector<2x32xf32>
    %90 = vector.extract_strided_slice %87 {offsets = [0, 64], sizes = [2, 32], strides = [1, 1]} : vector<2x96xf32> to vector<2x32xf32>
    %91 = vector.extract_strided_slice %81 {offsets = [0, 96], sizes = [2, 32], strides = [1, 1]} : vector<2x128xf32> to vector<2x32xf32>
    %92 = math.tanh %91 : vector<2x32xf32>
    %93 = arith.mulf %89, %54 : vector<2x32xf32>
    %94 = arith.mulf %88, %92 : vector<2x32xf32>
    %95 = arith.addf %93, %94 : vector<2x32xf32>
    %96 = math.tanh %95 : vector<2x32xf32>
    %97 = arith.mulf %90, %96 : vector<2x32xf32>
    %cst_17 = arith.constant dense<0.000000e+00> : vector<2x128xf32>
    %98 = tpu.matmul %97, %1, %cst_17 {dimension_numbers = #tpu.dot_dimension_numbers<[1], [0], [0], [1], [0, 0, 1, 1], [], []>} : vector<2x32xf32>, vector<32x128xf32>, vector<2x128xf32> -> vector<2x128xf32>
    %99 = vector.extract_strided_slice %14 {offsets = [2, 0, 0], sizes = [1, 2, 128], strides = [1, 1, 1]} : vector<8x2x128xf32> to vector<1x2x128xf32>
    %100 = vector.shape_cast %99 : vector<1x2x128xf32> to vector<2x128xf32>
    %101 = arith.addf %100, %78 : vector<2x128xf32>
    %102 = vector.extract_strided_slice %101 {offsets = [0, 0], sizes = [2, 96], strides = [1, 1]} : vector<2x128xf32> to vector<2x96xf32>
    %103 = arith.negf %102 : vector<2x96xf32>
    %104 = math.exp %103 : vector<2x96xf32>
    %cst_18 = arith.constant 1.000000e+00 : f32
    %105 = vector.broadcast %cst_18 : f32 to vector<2x96xf32>
    %106 = arith.addf %105, %104 : vector<2x96xf32>
    %107 = arith.divf %105, %106 : vector<2x96xf32>
    %108 = vector.extract_strided_slice %107 {offsets = [0, 0], sizes = [2, 32], strides = [1, 1]} : vector<2x96xf32> to vector<2x32xf32>
    %109 = vector.extract_strided_slice %107 {offsets = [0, 32], sizes = [2, 32], strides = [1, 1]} : vector<2x96xf32> to vector<2x32xf32>
    %110 = vector.extract_strided_slice %107 {offsets = [0, 64], sizes = [2, 32], strides = [1, 1]} : vector<2x96xf32> to vector<2x32xf32>
    %111 = vector.extract_strided_slice %101 {offsets = [0, 96], sizes = [2, 32], strides = [1, 1]} : vector<2x128xf32> to vector<2x32xf32>
    %112 = math.tanh %111 : vector<2x32xf32>
    %113 = arith.mulf %109, %74 : vector<2x32xf32>
    %114 = arith.mulf %108, %112 : vector<2x32xf32>
    %115 = arith.addf %113, %114 : vector<2x32xf32>
    %116 = math.tanh %115 : vector<2x32xf32>
    %117 = arith.mulf %110, %116 : vector<2x32xf32>
    %cst_19 = arith.constant dense<0.000000e+00> : vector<2x256xf32>
    %118 = tpu.matmul %117, %0, %cst_19 {dimension_numbers = #tpu.dot_dimension_numbers<[1], [0], [0], [1], [0, 0, 1, 1], [], []>} : vector<2x32xf32>, vector<32x256xf32>, vector<2x256xf32> -> vector<2x256xf32>
    %119 = vector.extract_strided_slice %118 {offsets = [0, 0], sizes = [2, 128], strides = [1, 1]} : vector<2x256xf32> to vector<2x128xf32>
    %120 = vector.extract_strided_slice %118 {offsets = [0, 128], sizes = [2, 128], strides = [1, 1]} : vector<2x256xf32> to vector<2x128xf32>
    %121 = arith.addf %120, %98 : vector<2x128xf32>
    %122 = arith.addf %121, %5 : vector<2x128xf32>
    %123 = vector.extract_strided_slice %122 {offsets = [0, 0], sizes = [2, 96], strides = [1, 1]} : vector<2x128xf32> to vector<2x96xf32>
    %124 = arith.negf %123 : vector<2x96xf32>
    %125 = math.exp %124 : vector<2x96xf32>
    %cst_20 = arith.constant 1.000000e+00 : f32
    %126 = vector.broadcast %cst_20 : f32 to vector<2x96xf32>
    %127 = arith.addf %126, %125 : vector<2x96xf32>
    %128 = arith.divf %126, %127 : vector<2x96xf32>
    %129 = vector.extract_strided_slice %128 {offsets = [0, 0], sizes = [2, 32], strides = [1, 1]} : vector<2x96xf32> to vector<2x32xf32>
    %130 = vector.extract_strided_slice %128 {offsets = [0, 32], sizes = [2, 32], strides = [1, 1]} : vector<2x96xf32> to vector<2x32xf32>
    %131 = vector.extract_strided_slice %128 {offsets = [0, 64], sizes = [2, 32], strides = [1, 1]} : vector<2x96xf32> to vector<2x32xf32>
    %132 = vector.extract_strided_slice %122 {offsets = [0, 96], sizes = [2, 32], strides = [1, 1]} : vector<2x128xf32> to vector<2x32xf32>
    %133 = math.tanh %132 : vector<2x32xf32>
    %134 = arith.mulf %130, %95 : vector<2x32xf32>
    %135 = arith.mulf %129, %133 : vector<2x32xf32>
    %136 = arith.addf %134, %135 : vector<2x32xf32>
    %137 = math.tanh %136 : vector<2x32xf32>
    %138 = arith.mulf %131, %137 : vector<2x32xf32>
    %cst_21 = arith.constant dense<0.000000e+00> : vector<2x128xf32>
    %139 = tpu.matmul %138, %1, %cst_21 {dimension_numbers = #tpu.dot_dimension_numbers<[1], [0], [0], [1], [0, 0, 1, 1], [], []>} : vector<2x32xf32>, vector<32x128xf32>, vector<2x128xf32> -> vector<2x128xf32>
    %140 = vector.extract_strided_slice %14 {offsets = [3, 0, 0], sizes = [1, 2, 128], strides = [1, 1, 1]} : vector<8x2x128xf32> to vector<1x2x128xf32>
    %141 = vector.shape_cast %140 : vector<1x2x128xf32> to vector<2x128xf32>
    %142 = arith.addf %141, %119 : vector<2x128xf32>
    %143 = vector.extract_strided_slice %142 {offsets = [0, 0], sizes = [2, 96], strides = [1, 1]} : vector<2x128xf32> to vector<2x96xf32>
    %144 = arith.negf %143 : vector<2x96xf32>
    %145 = math.exp %144 : vector<2x96xf32>
    %cst_22 = arith.constant 1.000000e+00 : f32
    %146 = vector.broadcast %cst_22 : f32 to vector<2x96xf32>
    %147 = arith.addf %146, %145 : vector<2x96xf32>
    %148 = arith.divf %146, %147 : vector<2x96xf32>
    %149 = vector.extract_strided_slice %148 {offsets = [0, 0], sizes = [2, 32], strides = [1, 1]} : vector<2x96xf32> to vector<2x32xf32>
    %150 = vector.extract_strided_slice %148 {offsets = [0, 32], sizes = [2, 32], strides = [1, 1]} : vector<2x96xf32> to vector<2x32xf32>
    %151 = vector.extract_strided_slice %148 {offsets = [0, 64], sizes = [2, 32], strides = [1, 1]} : vector<2x96xf32> to vector<2x32xf32>
    %152 = vector.extract_strided_slice %142 {offsets = [0, 96], sizes = [2, 32], strides = [1, 1]} : vector<2x128xf32> to vector<2x32xf32>
    %153 = math.tanh %152 : vector<2x32xf32>
    %154 = arith.mulf %150, %115 : vector<2x32xf32>
    %155 = arith.mulf %149, %153 : vector<2x32xf32>
    %156 = arith.addf %154, %155 : vector<2x32xf32>
    %157 = math.tanh %156 : vector<2x32xf32>
    %158 = arith.mulf %151, %157 : vector<2x32xf32>
    %cst_23 = arith.constant dense<0.000000e+00> : vector<2x256xf32>
    %159 = tpu.matmul %158, %0, %cst_23 {dimension_numbers = #tpu.dot_dimension_numbers<[1], [0], [0], [1], [0, 0, 1, 1], [], []>} : vector<2x32xf32>, vector<32x256xf32>, vector<2x256xf32> -> vector<2x256xf32>
    %160 = vector.extract_strided_slice %159 {offsets = [0, 0], sizes = [2, 128], strides = [1, 1]} : vector<2x256xf32> to vector<2x128xf32>
    %161 = vector.extract_strided_slice %159 {offsets = [0, 128], sizes = [2, 128], strides = [1, 1]} : vector<2x256xf32> to vector<2x128xf32>
    %162 = arith.addf %161, %139 : vector<2x128xf32>
    %163 = arith.addf %162, %5 : vector<2x128xf32>
    %164 = vector.extract_strided_slice %163 {offsets = [0, 0], sizes = [2, 96], strides = [1, 1]} : vector<2x128xf32> to vector<2x96xf32>
    %165 = arith.negf %164 : vector<2x96xf32>
    %166 = math.exp %165 : vector<2x96xf32>
    %cst_24 = arith.constant 1.000000e+00 : f32
    %167 = vector.broadcast %cst_24 : f32 to vector<2x96xf32>
    %168 = arith.addf %167, %166 : vector<2x96xf32>
    %169 = arith.divf %167, %168 : vector<2x96xf32>
    %170 = vector.extract_strided_slice %169 {offsets = [0, 0], sizes = [2, 32], strides = [1, 1]} : vector<2x96xf32> to vector<2x32xf32>
    %171 = vector.extract_strided_slice %169 {offsets = [0, 32], sizes = [2, 32], strides = [1, 1]} : vector<2x96xf32> to vector<2x32xf32>
    %172 = vector.extract_strided_slice %169 {offsets = [0, 64], sizes = [2, 32], strides = [1, 1]} : vector<2x96xf32> to vector<2x32xf32>
    %173 = vector.extract_strided_slice %163 {offsets = [0, 96], sizes = [2, 32], strides = [1, 1]} : vector<2x128xf32> to vector<2x32xf32>
    %174 = math.tanh %173 : vector<2x32xf32>
    %175 = arith.mulf %171, %136 : vector<2x32xf32>
    %176 = arith.mulf %170, %174 : vector<2x32xf32>
    %177 = arith.addf %175, %176 : vector<2x32xf32>
    %178 = math.tanh %177 : vector<2x32xf32>
    %179 = arith.mulf %172, %178 : vector<2x32xf32>
    %cst_25 = arith.constant dense<0.000000e+00> : vector<2x128xf32>
    %180 = tpu.matmul %179, %1, %cst_25 {dimension_numbers = #tpu.dot_dimension_numbers<[1], [0], [0], [1], [0, 0, 1, 1], [], []>} : vector<2x32xf32>, vector<32x128xf32>, vector<2x128xf32> -> vector<2x128xf32>
    %181 = vector.extract_strided_slice %14 {offsets = [4, 0, 0], sizes = [1, 2, 128], strides = [1, 1, 1]} : vector<8x2x128xf32> to vector<1x2x128xf32>
    %182 = vector.shape_cast %181 : vector<1x2x128xf32> to vector<2x128xf32>
    %183 = arith.addf %182, %160 : vector<2x128xf32>
    %184 = vector.extract_strided_slice %183 {offsets = [0, 0], sizes = [2, 96], strides = [1, 1]} : vector<2x128xf32> to vector<2x96xf32>
    %185 = arith.negf %184 : vector<2x96xf32>
    %186 = math.exp %185 : vector<2x96xf32>
    %cst_26 = arith.constant 1.000000e+00 : f32
    %187 = vector.broadcast %cst_26 : f32 to vector<2x96xf32>
    %188 = arith.addf %187, %186 : vector<2x96xf32>
    %189 = arith.divf %187, %188 : vector<2x96xf32>
    %190 = vector.extract_strided_slice %189 {offsets = [0, 0], sizes = [2, 32], strides = [1, 1]} : vector<2x96xf32> to vector<2x32xf32>
    %191 = vector.extract_strided_slice %189 {offsets = [0, 32], sizes = [2, 32], strides = [1, 1]} : vector<2x96xf32> to vector<2x32xf32>
    %192 = vector.extract_strided_slice %189 {offsets = [0, 64], sizes = [2, 32], strides = [1, 1]} : vector<2x96xf32> to vector<2x32xf32>
    %193 = vector.extract_strided_slice %183 {offsets = [0, 96], sizes = [2, 32], strides = [1, 1]} : vector<2x128xf32> to vector<2x32xf32>
    %194 = math.tanh %193 : vector<2x32xf32>
    %195 = arith.mulf %191, %156 : vector<2x32xf32>
    %196 = arith.mulf %190, %194 : vector<2x32xf32>
    %197 = arith.addf %195, %196 : vector<2x32xf32>
    %198 = math.tanh %197 : vector<2x32xf32>
    %199 = arith.mulf %192, %198 : vector<2x32xf32>
    %cst_27 = arith.constant dense<0.000000e+00> : vector<2x256xf32>
    %200 = tpu.matmul %199, %0, %cst_27 {dimension_numbers = #tpu.dot_dimension_numbers<[1], [0], [0], [1], [0, 0, 1, 1], [], []>} : vector<2x32xf32>, vector<32x256xf32>, vector<2x256xf32> -> vector<2x256xf32>
    %201 = vector.extract_strided_slice %200 {offsets = [0, 0], sizes = [2, 128], strides = [1, 1]} : vector<2x256xf32> to vector<2x128xf32>
    %202 = vector.extract_strided_slice %200 {offsets = [0, 128], sizes = [2, 128], strides = [1, 1]} : vector<2x256xf32> to vector<2x128xf32>
    %203 = arith.addf %202, %180 : vector<2x128xf32>
    %204 = arith.addf %203, %5 : vector<2x128xf32>
    %205 = vector.extract_strided_slice %204 {offsets = [0, 0], sizes = [2, 96], strides = [1, 1]} : vector<2x128xf32> to vector<2x96xf32>
    %206 = arith.negf %205 : vector<2x96xf32>
    %207 = math.exp %206 : vector<2x96xf32>
    %cst_28 = arith.constant 1.000000e+00 : f32
    %208 = vector.broadcast %cst_28 : f32 to vector<2x96xf32>
    %209 = arith.addf %208, %207 : vector<2x96xf32>
    %210 = arith.divf %208, %209 : vector<2x96xf32>
    %211 = vector.extract_strided_slice %210 {offsets = [0, 0], sizes = [2, 32], strides = [1, 1]} : vector<2x96xf32> to vector<2x32xf32>
    %212 = vector.extract_strided_slice %210 {offsets = [0, 32], sizes = [2, 32], strides = [1, 1]} : vector<2x96xf32> to vector<2x32xf32>
    %213 = vector.extract_strided_slice %210 {offsets = [0, 64], sizes = [2, 32], strides = [1, 1]} : vector<2x96xf32> to vector<2x32xf32>
    %214 = vector.extract_strided_slice %204 {offsets = [0, 96], sizes = [2, 32], strides = [1, 1]} : vector<2x128xf32> to vector<2x32xf32>
    %215 = math.tanh %214 : vector<2x32xf32>
    %216 = arith.mulf %212, %177 : vector<2x32xf32>
    %217 = arith.mulf %211, %215 : vector<2x32xf32>
    %218 = arith.addf %216, %217 : vector<2x32xf32>
    %219 = math.tanh %218 : vector<2x32xf32>
    %220 = arith.mulf %213, %219 : vector<2x32xf32>
    %cst_29 = arith.constant dense<0.000000e+00> : vector<2x128xf32>
    %221 = tpu.matmul %220, %1, %cst_29 {dimension_numbers = #tpu.dot_dimension_numbers<[1], [0], [0], [1], [0, 0, 1, 1], [], []>} : vector<2x32xf32>, vector<32x128xf32>, vector<2x128xf32> -> vector<2x128xf32>
    %222 = vector.extract_strided_slice %14 {offsets = [5, 0, 0], sizes = [1, 2, 128], strides = [1, 1, 1]} : vector<8x2x128xf32> to vector<1x2x128xf32>
    %223 = vector.shape_cast %222 : vector<1x2x128xf32> to vector<2x128xf32>
    %224 = arith.addf %223, %201 : vector<2x128xf32>
    %225 = vector.extract_strided_slice %224 {offsets = [0, 0], sizes = [2, 96], strides = [1, 1]} : vector<2x128xf32> to vector<2x96xf32>
    %226 = arith.negf %225 : vector<2x96xf32>
    %227 = math.exp %226 : vector<2x96xf32>
    %cst_30 = arith.constant 1.000000e+00 : f32
    %228 = vector.broadcast %cst_30 : f32 to vector<2x96xf32>
    %229 = arith.addf %228, %227 : vector<2x96xf32>
    %230 = arith.divf %228, %229 : vector<2x96xf32>
    %231 = vector.extract_strided_slice %230 {offsets = [0, 0], sizes = [2, 32], strides = [1, 1]} : vector<2x96xf32> to vector<2x32xf32>
    %232 = vector.extract_strided_slice %230 {offsets = [0, 32], sizes = [2, 32], strides = [1, 1]} : vector<2x96xf32> to vector<2x32xf32>
    %233 = vector.extract_strided_slice %230 {offsets = [0, 64], sizes = [2, 32], strides = [1, 1]} : vector<2x96xf32> to vector<2x32xf32>
    %234 = vector.extract_strided_slice %224 {offsets = [0, 96], sizes = [2, 32], strides = [1, 1]} : vector<2x128xf32> to vector<2x32xf32>
    %235 = math.tanh %234 : vector<2x32xf32>
    %236 = arith.mulf %232, %197 : vector<2x32xf32>
    %237 = arith.mulf %231, %235 : vector<2x32xf32>
    %238 = arith.addf %236, %237 : vector<2x32xf32>
    %239 = math.tanh %238 : vector<2x32xf32>
    %240 = arith.mulf %233, %239 : vector<2x32xf32>
    %cst_31 = arith.constant dense<0.000000e+00> : vector<2x256xf32>
    %241 = tpu.matmul %240, %0, %cst_31 {dimension_numbers = #tpu.dot_dimension_numbers<[1], [0], [0], [1], [0, 0, 1, 1], [], []>} : vector<2x32xf32>, vector<32x256xf32>, vector<2x256xf32> -> vector<2x256xf32>
    %242 = vector.extract_strided_slice %241 {offsets = [0, 0], sizes = [2, 128], strides = [1, 1]} : vector<2x256xf32> to vector<2x128xf32>
    %243 = vector.extract_strided_slice %241 {offsets = [0, 128], sizes = [2, 128], strides = [1, 1]} : vector<2x256xf32> to vector<2x128xf32>
    %244 = arith.addf %243, %221 : vector<2x128xf32>
    %245 = arith.addf %244, %5 : vector<2x128xf32>
    %246 = vector.extract_strided_slice %245 {offsets = [0, 0], sizes = [2, 96], strides = [1, 1]} : vector<2x128xf32> to vector<2x96xf32>
    %247 = arith.negf %246 : vector<2x96xf32>
    %248 = math.exp %247 : vector<2x96xf32>
    %cst_32 = arith.constant 1.000000e+00 : f32
    %249 = vector.broadcast %cst_32 : f32 to vector<2x96xf32>
    %250 = arith.addf %249, %248 : vector<2x96xf32>
    %251 = arith.divf %249, %250 : vector<2x96xf32>
    %252 = vector.extract_strided_slice %251 {offsets = [0, 0], sizes = [2, 32], strides = [1, 1]} : vector<2x96xf32> to vector<2x32xf32>
    %253 = vector.extract_strided_slice %251 {offsets = [0, 32], sizes = [2, 32], strides = [1, 1]} : vector<2x96xf32> to vector<2x32xf32>
    %254 = vector.extract_strided_slice %251 {offsets = [0, 64], sizes = [2, 32], strides = [1, 1]} : vector<2x96xf32> to vector<2x32xf32>
    %255 = vector.extract_strided_slice %245 {offsets = [0, 96], sizes = [2, 32], strides = [1, 1]} : vector<2x128xf32> to vector<2x32xf32>
    %256 = math.tanh %255 : vector<2x32xf32>
    %257 = arith.mulf %253, %218 : vector<2x32xf32>
    %258 = arith.mulf %252, %256 : vector<2x32xf32>
    %259 = arith.addf %257, %258 : vector<2x32xf32>
    %260 = math.tanh %259 : vector<2x32xf32>
    %261 = arith.mulf %254, %260 : vector<2x32xf32>
    %cst_33 = arith.constant dense<0.000000e+00> : vector<2x128xf32>
    %262 = tpu.matmul %261, %1, %cst_33 {dimension_numbers = #tpu.dot_dimension_numbers<[1], [0], [0], [1], [0, 0, 1, 1], [], []>} : vector<2x32xf32>, vector<32x128xf32>, vector<2x128xf32> -> vector<2x128xf32>
    %263 = vector.extract_strided_slice %14 {offsets = [6, 0, 0], sizes = [1, 2, 128], strides = [1, 1, 1]} : vector<8x2x128xf32> to vector<1x2x128xf32>
    %264 = vector.shape_cast %263 : vector<1x2x128xf32> to vector<2x128xf32>
    %265 = arith.addf %264, %242 : vector<2x128xf32>
    %266 = vector.extract_strided_slice %265 {offsets = [0, 0], sizes = [2, 96], strides = [1, 1]} : vector<2x128xf32> to vector<2x96xf32>
    %267 = arith.negf %266 : vector<2x96xf32>
    %268 = math.exp %267 : vector<2x96xf32>
    %cst_34 = arith.constant 1.000000e+00 : f32
    %269 = vector.broadcast %cst_34 : f32 to vector<2x96xf32>
    %270 = arith.addf %269, %268 : vector<2x96xf32>
    %271 = arith.divf %269, %270 : vector<2x96xf32>
    %272 = vector.extract_strided_slice %271 {offsets = [0, 0], sizes = [2, 32], strides = [1, 1]} : vector<2x96xf32> to vector<2x32xf32>
    %273 = vector.extract_strided_slice %271 {offsets = [0, 32], sizes = [2, 32], strides = [1, 1]} : vector<2x96xf32> to vector<2x32xf32>
    %274 = vector.extract_strided_slice %271 {offsets = [0, 64], sizes = [2, 32], strides = [1, 1]} : vector<2x96xf32> to vector<2x32xf32>
    %275 = vector.extract_strided_slice %265 {offsets = [0, 96], sizes = [2, 32], strides = [1, 1]} : vector<2x128xf32> to vector<2x32xf32>
    %276 = math.tanh %275 : vector<2x32xf32>
    %277 = arith.mulf %273, %238 : vector<2x32xf32>
    %278 = arith.mulf %272, %276 : vector<2x32xf32>
    %279 = arith.addf %277, %278 : vector<2x32xf32>
    %280 = math.tanh %279 : vector<2x32xf32>
    %281 = arith.mulf %274, %280 : vector<2x32xf32>
    %cst_35 = arith.constant dense<0.000000e+00> : vector<2x256xf32>
    %282 = tpu.matmul %281, %0, %cst_35 {dimension_numbers = #tpu.dot_dimension_numbers<[1], [0], [0], [1], [0, 0, 1, 1], [], []>} : vector<2x32xf32>, vector<32x256xf32>, vector<2x256xf32> -> vector<2x256xf32>
    %283 = vector.extract_strided_slice %282 {offsets = [0, 0], sizes = [2, 128], strides = [1, 1]} : vector<2x256xf32> to vector<2x128xf32>
    %284 = vector.extract_strided_slice %282 {offsets = [0, 128], sizes = [2, 128], strides = [1, 1]} : vector<2x256xf32> to vector<2x128xf32>
    %285 = arith.addf %284, %262 : vector<2x128xf32>
    %286 = arith.addf %285, %5 : vector<2x128xf32>
    %287 = vector.extract_strided_slice %286 {offsets = [0, 0], sizes = [2, 96], strides = [1, 1]} : vector<2x128xf32> to vector<2x96xf32>
    %288 = arith.negf %287 : vector<2x96xf32>
    %289 = math.exp %288 : vector<2x96xf32>
    %cst_36 = arith.constant 1.000000e+00 : f32
    %290 = vector.broadcast %cst_36 : f32 to vector<2x96xf32>
    %291 = arith.addf %290, %289 : vector<2x96xf32>
    %292 = arith.divf %290, %291 : vector<2x96xf32>
    %293 = vector.extract_strided_slice %292 {offsets = [0, 0], sizes = [2, 32], strides = [1, 1]} : vector<2x96xf32> to vector<2x32xf32>
    %294 = vector.extract_strided_slice %292 {offsets = [0, 32], sizes = [2, 32], strides = [1, 1]} : vector<2x96xf32> to vector<2x32xf32>
    %295 = vector.extract_strided_slice %292 {offsets = [0, 64], sizes = [2, 32], strides = [1, 1]} : vector<2x96xf32> to vector<2x32xf32>
    %296 = vector.extract_strided_slice %286 {offsets = [0, 96], sizes = [2, 32], strides = [1, 1]} : vector<2x128xf32> to vector<2x32xf32>
    %297 = math.tanh %296 : vector<2x32xf32>
    %298 = arith.mulf %294, %259 : vector<2x32xf32>
    %299 = arith.mulf %293, %297 : vector<2x32xf32>
    %300 = arith.addf %298, %299 : vector<2x32xf32>
    %301 = math.tanh %300 : vector<2x32xf32>
    %302 = arith.mulf %295, %301 : vector<2x32xf32>
    %cst_37 = arith.constant dense<0.000000e+00> : vector<2x128xf32>
    %303 = tpu.matmul %302, %1, %cst_37 {dimension_numbers = #tpu.dot_dimension_numbers<[1], [0], [0], [1], [0, 0, 1, 1], [], []>} : vector<2x32xf32>, vector<32x128xf32>, vector<2x128xf32> -> vector<2x128xf32>
    %304 = vector.extract_strided_slice %14 {offsets = [7, 0, 0], sizes = [1, 2, 128], strides = [1, 1, 1]} : vector<8x2x128xf32> to vector<1x2x128xf32>
    %305 = vector.shape_cast %304 : vector<1x2x128xf32> to vector<2x128xf32>
    %306 = arith.addf %305, %283 : vector<2x128xf32>
    %307 = vector.extract_strided_slice %306 {offsets = [0, 0], sizes = [2, 96], strides = [1, 1]} : vector<2x128xf32> to vector<2x96xf32>
    %308 = arith.negf %307 : vector<2x96xf32>
    %309 = math.exp %308 : vector<2x96xf32>
    %cst_38 = arith.constant 1.000000e+00 : f32
    %310 = vector.broadcast %cst_38 : f32 to vector<2x96xf32>
    %311 = arith.addf %310, %309 : vector<2x96xf32>
    %312 = arith.divf %310, %311 : vector<2x96xf32>
    %313 = vector.extract_strided_slice %312 {offsets = [0, 0], sizes = [2, 32], strides = [1, 1]} : vector<2x96xf32> to vector<2x32xf32>
    %314 = vector.extract_strided_slice %312 {offsets = [0, 32], sizes = [2, 32], strides = [1, 1]} : vector<2x96xf32> to vector<2x32xf32>
    %315 = vector.extract_strided_slice %312 {offsets = [0, 64], sizes = [2, 32], strides = [1, 1]} : vector<2x96xf32> to vector<2x32xf32>
    %316 = vector.extract_strided_slice %306 {offsets = [0, 96], sizes = [2, 32], strides = [1, 1]} : vector<2x128xf32> to vector<2x32xf32>
    %317 = math.tanh %316 : vector<2x32xf32>
    %318 = arith.mulf %314, %279 : vector<2x32xf32>
    %319 = arith.mulf %313, %317 : vector<2x32xf32>
    %320 = arith.addf %318, %319 : vector<2x32xf32>
    %321 = math.tanh %320 : vector<2x32xf32>
    %322 = arith.mulf %315, %321 : vector<2x32xf32>
    %cst_39 = arith.constant dense<0.000000e+00> : vector<2x256xf32>
    %323 = tpu.matmul %322, %0, %cst_39 {dimension_numbers = #tpu.dot_dimension_numbers<[1], [0], [0], [1], [0, 0, 1, 1], [], []>} : vector<2x32xf32>, vector<32x256xf32>, vector<2x256xf32> -> vector<2x256xf32>
    %324 = vector.extract_strided_slice %323 {offsets = [0, 128], sizes = [2, 128], strides = [1, 1]} : vector<2x256xf32> to vector<2x128xf32>
    %325 = arith.addf %324, %303 : vector<2x128xf32>
    %326 = arith.addf %325, %5 : vector<2x128xf32>
    %327 = vector.extract_strided_slice %326 {offsets = [0, 0], sizes = [2, 96], strides = [1, 1]} : vector<2x128xf32> to vector<2x96xf32>
    %328 = arith.negf %327 : vector<2x96xf32>
    %329 = math.exp %328 : vector<2x96xf32>
    %cst_40 = arith.constant 1.000000e+00 : f32
    %330 = vector.broadcast %cst_40 : f32 to vector<2x96xf32>
    %331 = arith.addf %330, %329 : vector<2x96xf32>
    %332 = arith.divf %330, %331 : vector<2x96xf32>
    %333 = vector.extract_strided_slice %332 {offsets = [0, 0], sizes = [2, 32], strides = [1, 1]} : vector<2x96xf32> to vector<2x32xf32>
    %334 = vector.extract_strided_slice %332 {offsets = [0, 32], sizes = [2, 32], strides = [1, 1]} : vector<2x96xf32> to vector<2x32xf32>
    %335 = vector.extract_strided_slice %332 {offsets = [0, 64], sizes = [2, 32], strides = [1, 1]} : vector<2x96xf32> to vector<2x32xf32>
    %336 = vector.extract_strided_slice %326 {offsets = [0, 96], sizes = [2, 32], strides = [1, 1]} : vector<2x128xf32> to vector<2x32xf32>
    %337 = math.tanh %336 : vector<2x32xf32>
    %338 = arith.mulf %334, %300 : vector<2x32xf32>
    %339 = arith.mulf %333, %337 : vector<2x32xf32>
    %340 = arith.addf %338, %339 : vector<2x32xf32>
    %341 = math.tanh %340 : vector<2x32xf32>
    %342 = arith.mulf %335, %341 : vector<2x32xf32>
    %c56 = arith.constant 56 : index
    %c0_41 = arith.constant 0 : index
    %343 = vector.load %arg2[%c56, %c0_41] : memref<96x128xf32, #tpu.memory_space<vmem>>, vector<32x128xf32>
    %c88 = arith.constant 88 : index
    %c0_42 = arith.constant 0 : index
    %344 = vector.load %arg2[%c88, %c0_42] : memref<96x128xf32, #tpu.memory_space<vmem>>, vector<1x128xf32>
    %cst_43 = arith.constant dense<0.000000e+00> : vector<2x128xf32>
    %345 = tpu.matmul %342, %343, %cst_43 {dimension_numbers = #tpu.dot_dimension_numbers<[1], [0], [0], [1], [0, 0, 1, 1], [], []>} : vector<2x32xf32>, vector<32x128xf32>, vector<2x128xf32> -> vector<2x128xf32>
    %346 = vector.broadcast %344 : vector<1x128xf32> to vector<2x128xf32>
    %347 = arith.addf %345, %346 : vector<2x128xf32>
    %348 = vector.extract_strided_slice %347 {offsets = [0, 0], sizes = [2, 1], strides = [1, 1]} : vector<2x128xf32> to vector<2x1xf32>
    %c0_44 = arith.constant 0 : index
    %c0_45 = arith.constant 0 : index
    %349 = vector.load %arg3[%c0_44, %c0_45] : memref<2x1xf32, #tpu.memory_space<vmem>>, vector<2x1xf32>
    tpu.vector_store %arg3[%c0_44, %c0_45], %348 {strides = array<i32>} : memref<2x1xf32, #tpu.memory_space<vmem>>, vector<2x1xf32>,
    return
  }
}

</mosaic_0001>

<llo_original>
// kernel: tpu_custom_call.1
$region0: #{tpu_custom_call.1}
  #allocation0 [shape = 'u32[]', space=smem, size = 0x4, offset = 0x4, fixed_abs, tag = 'smem constant byte address 0x4 - core index']
  #allocation1 [shape = 'u32[144,128]{1,0:T(1,128)}', space=vmem, size = 0x12000, scoped, tag = 'internal scratch']
  %s0 = inlined_call_operand.vmem [shape: f32[8,2,1], index: 0, kind: input, shape index: {}]
  %s1 = inlined_call_operand.hbm [shape: f32[32,256], index: 1, kind: input, shape index: {}]
  %s2 = inlined_call_operand.hbm [shape: f32[96,128], index: 2, kind: input, shape index: {}]
  %s3 = inlined_call_operand.vmem [shape: f32[2,1], index: 3, kind: output, shape index: {}]
  %s4 = sld [smem:[#allocation0]]
  $region30: #{tpu_custom_call.1} parent=0
    _
  %s6 = ssub.s32 1, %s4
  %s7 = scalar_select 0, %s6, %s4
  $region1: #{tpu_custom_call.1} parent=0
    #allocation2 [shape = 'u8[32768]{0}', space=vmem, size = 0x8000, scoped, tag = 'input window, operand 1, single buffered']
    #allocation3 [shape = 's32[1]{0}', space=sflag, size = 0x4, scoped, tag = 'scoped memory for tpu_custom_call.1']
    #allocation4 [shape = 'u8[49152]{0}', space=vmem, size = 0xc000, scoped, tag = 'input window, operand 2, single buffered']
    #allocation5 [shape = 's32[1]{0}', space=sflag, size = 0x4, scoped, tag = 'scoped memory for tpu_custom_call.1']
    %8 = vsyncpa [#allocation3], 0
    %9 = vsyncpa [#allocation5], 0
    // Predicated region
    $region2: #{tpu_custom_call.1} parent=1 // pred_check
      _
    $region3: #{tpu_custom_call.1} parent=1 // pred_check_branch
      %11 = sbr.rel (0) target = $region5
    $region4: #{tpu_custom_call.1} parent=1 // pred_region
      _
    $region5: #{tpu_custom_call.1} parent=1 // pred_fallthru
      _
    // Predicated region
    $region6: #{tpu_custom_call.1} parent=1 // pred_check
      _
    $region7: #{tpu_custom_call.1} parent=1 // pred_check_branch
      %13 = sbr.rel (0) target = $region9
    $region8: #{tpu_custom_call.1} parent=1 // pred_region
      %s15 = ssub.s32 1024, 1024
      %16 = vsyncadd [#allocation3], %s15
      %s17 = sshll.u32 [#allocation2], 4
      %s18 = int_to_ptr.vmem [resolvable:$true] %s17
      %23 = dma.hbm_to_vmem [thread:$0]  %s1, 1024, %s18, [#allocation3], 256, 256, 16
    $region9: #{tpu_custom_call.1} parent=1 // pred_fallthru
      _
    // Predicated region
    $region10: #{tpu_custom_call.1} parent=1 // pred_check
      _
    $region11: #{tpu_custom_call.1} parent=1 // pred_check_branch
      %25 = sbr.rel (0) target = $region13
    $region12: #{tpu_custom_call.1} parent=1 // pred_region
      %s27 = ssub.s32 1536, 1536
      %28 = vsyncadd [#allocation5], %s27
      %s29 = sshll.u32 [#allocation4], 4
      %s30 = int_to_ptr.vmem [resolvable:$true] %s29
      %35 = dma.hbm_to_vmem [thread:$0]  %s2, 1536, %s30, [#allocation5], 128, 128, 8
    $region13: #{tpu_custom_call.1} parent=1 // pred_fallthru
      _
    // Predicated region
    $region14: #{tpu_custom_call.1} parent=1 // pred_check
      _
    $region15: #{tpu_custom_call.1} parent=1 // pred_check_branch
      %37 = sbr.rel (0) target = $region17
    $region16: #{tpu_custom_call.1} parent=1 // pred_region
      %38 = dma.done [#allocation3], 1024
    $region17: #{tpu_custom_call.1} parent=1 // pred_fallthru
      _
    // Predicated region
    $region18: #{tpu_custom_call.1} parent=1 // pred_check
      _
    $region19: #{tpu_custom_call.1} parent=1 // pred_check_branch
      %40 = sbr.rel (0) target = $region21
    $region20: #{tpu_custom_call.1} parent=1 // pred_region
      %41 = dma.done [#allocation5], 1536
    $region21: #{tpu_custom_call.1} parent=1 // pred_fallthru
      _
    %v42 = vld [vmem:[#allocation2] sm:$0xff]
    %v43 = vld [vmem:[#allocation2 + $0x8] sm:$0xff]
    %v44 = vld [vmem:[#allocation2 + $0x10] sm:$0xff]
    %v45 = vld [vmem:[#allocation2 + $0x18] sm:$0xff]
    %v46 = vld [vmem:[#allocation2 + $0x20] sm:$0xff]
    %v47 = vld [vmem:[#allocation2 + $0x28] sm:$0xff]
    %v48 = vld [vmem:[#allocation2 + $0x30] sm:$0xff]
    %v49 = vld [vmem:[#allocation2 + $0x38] sm:$0xff]
    %v50 = vld [vmem:[#allocation4 + $0x18] sm:$0xff]
    %v51 = vld [vmem:[#allocation4 + $0x20] sm:$0xff]
    %v52 = vld [vmem:[#allocation4 + $0x28] sm:$0xff]
    %v53 = vld [vmem:[#allocation4 + $0x30] sm:$0xff]
    %v54 = vld [vmem:[#allocation4 + $0x8] sm:$0x1]
    %v55 = vld [vmem:[#allocation4 + $0x10] sm:$0x1]
    %v56 = vlaneseq
    %v57 = vshrl.u32 %v56, 7
    %v58 = vsub.s32 0, %v57
    %v59 = vrot.slane %v55, %v58
    %v60 = vld [vmem:[#allocation4] sm:$0x1]
    %v61 = vld [vmem:[%s0] sm:$0x3]
    %v62 = vld [vmem:[%s0 + $0x2] sm:$0x3]
    %v63 = vld [vmem:[%s0 + $0x4] sm:$0x3]
    %v64 = vld [vmem:[%s0 + $0x6] sm:$0x3]
    %v65 = vld [vmem:[%s0 + $0x8] sm:$0x3]
    %v66 = vld [vmem:[%s0 + $0xa] sm:$0x3]
    %v67 = vld [vmem:[%s0 + $0xc] sm:$0x3]
    %v68 = vld [vmem:[%s0 + $0xe] sm:$0x3]
    %70 = vset.pattern.permute.xlu0 0
    %71 = vperm.xlu0 %70, %v61
    %v72 = vpop.permute.xlu0 %71
    %75 = vset.pattern.permute.xlu0 0
    %76 = vperm.xlu0 %75, %v62
    %v77 = vpop.permute.xlu0 %76
    %80 = vset.pattern.permute.xlu0 0
    %81 = vperm.xlu0 %80, %v63
    %v82 = vpop.permute.xlu0 %81
    %85 = vset.pattern.permute.xlu0 0
    %86 = vperm.xlu0 %85, %v64
    %v87 = vpop.permute.xlu0 %86
    %90 = vset.pattern.permute.xlu0 0
    %91 = vperm.xlu0 %90, %v65
    %v92 = vpop.permute.xlu0 %91
    %95 = vset.pattern.permute.xlu0 0
    %96 = vperm.xlu0 %95, %v66
    %v97 = vpop.permute.xlu0 %96
    %100 = vset.pattern.permute.xlu0 0
    %101 = vperm.xlu0 %100, %v67
    %v102 = vpop.permute.xlu0 %101
    %105 = vset.pattern.permute.xlu0 0
    %106 = vperm.xlu0 %105, %v68
    %v107 = vpop.permute.xlu0 %106
    %v109 = vlaneseq
    %v110 = vshrl.u32 %v109, 7
    %v111 = vsub.s32 0, %v110
    %v112 = vrot.slane %v60, %v111
    %v113 = vmul.f32 %v72, %v112
    %v114 = vmul.f32 %v77, %v112
    %v115 = vmul.f32 %v82, %v112
    %v116 = vmul.f32 %v87, %v112
    %v117 = vmul.f32 %v92, %v112
    %v118 = vmul.f32 %v97, %v112
    %v119 = vmul.f32 %v102, %v112
    %v120 = vmul.f32 %v107, %v112
    %v121 = vlaneseq
    %v122 = vshrl.u32 %v121, 7
    %v123 = vsub.s32 0, %v122
    %v124 = vrot.slane %v54, %v123
    %v125 = vadd.f32 %v113, %v124
    %v126 = vadd.f32 %v114, %v124
    %v127 = vadd.f32 %v115, %v124
    %v128 = vadd.f32 %v116, %v124
    %v129 = vadd.f32 %v117, %v124
    %v130 = vadd.f32 %v118, %v124
    %v131 = vadd.f32 %v119, %v124
    %v132 = vadd.f32 %v120, %v124
    %v133 = vadd.f32 %v125, 0.0
    %v134 = vxor.u32 %v133, 2147483648
    %v135 = vmul.f32 %v134, 1.442695
    %v136 = vpow.pop %v135
    %v137 = vadd.f32 %v136, 1.0
    %v138 = vrcp.pop %v137
    %v139 = vmul.f32 1.0, %v138
    %v140 = vtanh.pop %v133
    %v141 = vmul.f32 %v139, 0.0
    %143 = vrot.lane.b32.xlu0 %v140, 32
    %v144 = vpop.permute.xlu0 %143
    %v146 = vmul.f32 %v139, %v144
    %148 = vrot.lane.b32.xlu0 %v146, 32
    %v149 = vpop.permute.xlu0 %148
    %v151 = vadd.f32 %v141, %v149
    %v152 = vtanh.pop %v151
    %154 = vrot.lane.b32.xlu0 %v152, 32
    %v155 = vpop.permute.xlu0 %154
    %v157 = vmul.f32 %v139, %v155
    %159 = vrot.lane.b32.xlu0 %v157, 64
    %v160 = vpop.permute.xlu0 %159
    %vm161 = vcmask 261120
    %v162 = vsel %vm161, %v160, 0
    %164 = vmatprep.subr.mxu0 0.0
    %165 = vmatpush1.msra.mxu0 0.0
    %166 = vmatprep.subr.mxu0 0.0
    %167 = vmatpush1.msra.mxu0 0.0
    %168 = vmatprep.subr.mxu0 0.0
    %169 = vmatpush1.msra.mxu0 0.0
    %170 = vmatprep.subr.mxu0 0.0
    %171 = vmatpush1.msra.mxu0 0.0
    %172 = vmatprep.subr.mxu0 0.0
    %173 = vmatpush1.msra.mxu0 0.0
    %174 = vmatprep.subr.mxu0 0.0
    %175 = vmatpush1.msra.mxu0 0.0
    %176 = vmatprep.subr.mxu0 0.0
    %177 = vmatpush1.msra.mxu0 0.0
    %178 = vmatprep.subr.mxu0 0.0
    %179 = vmatpush1.msra.mxu0 0.0
    %180 = vmatprep.subr.mxu0 0.0
    %181 = vmatpush1.msra.mxu0 0.0
    %182 = vmatprep.subr.mxu0 0.0
    %183 = vmatpush1.msra.mxu0 0.0
    %184 = vmatprep.subr.mxu0 0.0
    %185 = vmatpush1.msra.mxu0 0.0
    %186 = vmatprep.subr.mxu0 0.0
    %187 = vmatpush1.msra.mxu0 0.0
    %188 = vmatprep.subr.mxu0 %v49
    %189 = vmatpush1.msra.mxu0 %v48
    %190 = vmatprep.subr.mxu0 %v47
    %191 = vmatpush1.msra.mxu0 %v46
    %192 = vmatprep.subr.mxu0 %v45
    %193 = vmatpush1.msra.mxu0 %v44
    %194 = vmatprep.subr.mxu0 %v43
    %195 = vmatpush1.msra.mxu0 %v42
    %196 = vmatprep.subr.mxu0 0.0
    %197 = vmatpush2.msra.mxu0 0.0
    %198 = vmatprep.subr.mxu0 0.0
    %199 = vmatpush2.msra.mxu0 0.0
    %200 = vmatprep.subr.mxu0 0.0
    %201 = vmatpush2.msra.mxu0 0.0
    %202 = vmatprep.subr.mxu0 0.0
    %203 = vmatpush2.msra.mxu0 0.0
    %204 = vmatprep.subr.mxu0 0.0
    %205 = vmatpush2.msra.mxu0 0.0
    %206 = vmatprep.subr.mxu0 0.0
    %207 = vmatpush2.msra.mxu0 0.0
    %208 = vmatprep.subr.mxu0 0.0
    %209 = vmatpush2.msra.mxu0 0.0
    %210 = vmatprep.subr.mxu0 0.0
    %211 = vmatpush2.msra.mxu0 0.0
    %212 = vmatprep.subr.mxu0 0.0
    %213 = vmatpush2.msra.mxu0 0.0
    %214 = vmatprep.subr.mxu0 0.0
    %215 = vmatpush2.msra.mxu0 0.0
    %216 = vmatprep.subr.mxu0 0.0
    %217 = vmatpush2.msra.mxu0 0.0
    %218 = vmatprep.subr.mxu0 0.0
    %219 = vmatpush2.msra.mxu0 0.0
    %220 = vmatprep.subr.mxu0 0.0
    %221 = vmatpush2.msra.mxu0 0.0
    %222 = vmatprep.subr.mxu0 0.0
    %223 = vmatpush2.msra.mxu0 0.0
    %224 = vmatprep.subr.mxu0 0.0
    %225 = vmatpush2.msra.mxu0 0.0
    %226 = vmatprep.subr.mxu0 0.0
    %227 = vmatpush2.msra.mxu0 0.0
    %228 = vmatprep.mubr.f32.mxu0 0.0
    %229 = vmatmul.mubr.f32.gmra.mxu0 %v162
    %v230 = vpop.f32.mrf.mxu0
    %v231 = vadd.f32 0.0, %v230
    %v232 = vpop.f32.mrf.mxu0
    %v233 = vadd.f32 0.0, %v232
    %234 = vdwg.mxu0
    %v235 = vadd.f32 %v233, 0.0
    %v236 = vadd.f32 %v235, %v59
    %v237 = vxor.u32 %v236, 2147483648
    %v238 = vmul.f32 %v237, 1.442695
    %v239 = vpow.pop %v238
    %v240 = vadd.f32 %v239, 1.0
    %v241 = vrcp.pop %v240
    %v242 = vmul.f32 1.0, %v241
    %v243 = vtanh.pop %v236
    %v244 = vmul.f32 %v242, 0.0
    %246 = vrot.lane.b32.xlu0 %v243, 32
    %v247 = vpop.permute.xlu0 %246
    %v249 = vmul.f32 %v242, %v247
    %251 = vrot.lane.b32.xlu0 %v249, 32
    %v252 = vpop.permute.xlu0 %251
    %v254 = vadd.f32 %v244, %v252
    %v255 = vtanh.pop %v254
    %257 = vrot.lane.b32.xlu0 %v255, 32
    %v258 = vpop.permute.xlu0 %257
    %v260 = vmul.f32 %v242, %v258
    %262 = vrot.lane.b32.xlu0 %v260, 64
    %v263 = vpop.permute.xlu0 %262
    %v264 = vsel %vm161, %v263, 0
    %266 = vmatprep.subr.mxu0 0.0
    %267 = vmatpush1.msra.mxu0 0.0
    %268 = vmatprep.subr.mxu0 0.0
    %269 = vmatpush1.msra.mxu0 0.0
    %270 = vmatprep.subr.mxu0 0.0
    %271 = vmatpush1.msra.mxu0 0.0
    %272 = vmatprep.subr.mxu0 0.0
    %273 = vmatpush1.msra.mxu0 0.0
    %274 = vmatprep.subr.mxu0 0.0
    %275 = vmatpush1.msra.mxu0 0.0
    %276 = vmatprep.subr.mxu0 0.0
    %277 = vmatpush1.msra.mxu0 0.0
    %278 = vmatprep.subr.mxu0 0.0
    %279 = vmatpush1.msra.mxu0 0.0
    %280 = vmatprep.subr.mxu0 0.0
    %281 = vmatpush1.msra.mxu0 0.0
    %282 = vmatprep.subr.mxu0 0.0
    %283 = vmatpush1.msra.mxu0 0.0
    %284 = vmatprep.subr.mxu0 0.0
    %285 = vmatpush1.msra.mxu0 0.0
    %286 = vmatprep.subr.mxu0 0.0
    %287 = vmatpush1.msra.mxu0 0.0
    %288 = vmatprep.subr.mxu0 0.0
    %289 = vmatpush1.msra.mxu0 0.0
    %290 = vmatprep.subr.mxu0 0.0
    %291 = vmatpush1.msra.mxu0 %v53
    %292 = vmatprep.subr.mxu0 0.0
    %293 = vmatpush1.msra.mxu0 %v52
    %294 = vmatprep.subr.mxu0 0.0
    %295 = vmatpush1.msra.mxu0 %v51
    %296 = vmatprep.subr.mxu0 0.0
    %297 = vmatpush1.msra.mxu0 %v50
    %298 = vmatprep.subr.mxu0 0.0
    %299 = vmatpush2.msra.mxu0 0.0
    %300 = vmatprep.subr.mxu0 0.0
    %301 = vmatpush2.msra.mxu0 0.0
    %302 = vmatprep.subr.mxu0 0.0
    %303 = vmatpush2.msra.mxu0 0.0
    %304 = vmatprep.subr.mxu0 0.0
    %305 = vmatpush2.msra.mxu0 0.0
    %306 = vmatprep.subr.mxu0 0.0
    %307 = vmatpush2.msra.mxu0 0.0
    %308 = vmatprep.subr.mxu0 0.0
    %309 = vmatpush2.msra.mxu0 0.0
    %310 = vmatprep.subr.mxu0 0.0
    %311 = vmatpush2.msra.mxu0 0.0
    %312 = vmatprep.subr.mxu0 0.0
    %313 = vmatpush2.msra.mxu0 0.0
    %314 = vmatprep.subr.mxu0 0.0
    %315 = vmatpush2.msra.mxu0 0.0
    %316 = vmatprep.subr.mxu0 0.0
    %317 = vmatpush2.msra.mxu0 0.0
    %318 = vmatprep.subr.mxu0 0.0
    %319 = vmatpush2.msra.mxu0 0.0
    %320 = vmatprep.subr.mxu0 0.0
    %321 = vmatpush2.msra.mxu0 0.0
    %322 = vmatprep.subr.mxu0 0.0
    %323 = vmatpush2.msra.mxu0 0.0
    %324 = vmatprep.subr.mxu0 0.0
    %325 = vmatpush2.msra.mxu0 0.0
    %326 = vmatprep.subr.mxu0 0.0
    %327 = vmatpush2.msra.mxu0 0.0
    %328 = vmatprep.subr.mxu0 0.0
    %329 = vmatpush2.msra.mxu0 0.0
    %330 = vmatprep.mubr.f32.mxu0 0.0
    %331 = vmatmul.mubr.f32.gmra.mxu0 %v264
    %v332 = vpop.f32.mrf.mxu0
    %v333 = vadd.f32 0.0, %v332
    %v334 = vpop.f32.mrf.mxu0
    %335 = vdwg.mxu0
    %v336 = vadd.f32 %v126, %v231
    %v337 = vxor.u32 %v336, 2147483648
    %v338 = vmul.f32 %v337, 1.442695
    %v339 = vpow.pop %v338
    %v340 = vadd.f32 %v339, 1.0
    %v341 = vrcp.pop %v340
    %v342 = vmul.f32 1.0, %v341
    %v343 = vtanh.pop %v336
    %v344 = vmul.f32 %v342, %v151
    %346 = vrot.lane.b32.xlu0 %v343, 32
    %v347 = vpop.permute.xlu0 %346
    %v349 = vmul.f32 %v342, %v347
    %351 = vrot.lane.b32.xlu0 %v349, 32
    %v352 = vpop.permute.xlu0 %351
    %v354 = vadd.f32 %v344, %v352
    %v355 = vtanh.pop %v354
    %357 = vrot.lane.b32.xlu0 %v355, 32
    %v358 = vpop.permute.xlu0 %357
    %v360 = vmul.f32 %v342, %v358
    %362 = vrot.lane.b32.xlu0 %v360, 64
    %v363 = vpop.permute.xlu0 %362
    %v364 = vsel %vm161, %v363, 0
    %366 = vmatprep.subr.mxu0 0.0
    %367 = vmatpush1.msra.mxu0 0.0
    %368 = vmatprep.subr.mxu0 0.0
    %369 = vmatpush1.msra.mxu0 0.0
    %370 = vmatprep.subr.mxu0 0.0
    %371 = vmatpush1.msra.mxu0 0.0
    %372 = vmatprep.subr.mxu0 0.0
    %373 = vmatpush1.msra.mxu0 0.0
    %374 = vmatprep.subr.mxu0 0.0
    %375 = vmatpush1.msra.mxu0 0.0
    %376 = vmatprep.subr.mxu0 0.0
    %377 = vmatpush1.msra.mxu0 0.0
    %378 = vmatprep.subr.mxu0 0.0
    %379 = vmatpush1.msra.mxu0 0.0
    %380 = vmatprep.subr.mxu0 0.0
    %381 = vmatpush1.msra.mxu0 0.0
    %382 = vmatprep.subr.mxu0 0.0
    %383 = vmatpush1.msra.mxu0 0.0
    %384 = vmatprep.subr.mxu0 0.0
    %385 = vmatpush1.msra.mxu0 0.0
    %386 = vmatprep.subr.mxu0 0.0
    %387 = vmatpush1.msra.mxu0 0.0
    %388 = vmatprep.subr.mxu0 0.0
    %389 = vmatpush1.msra.mxu0 0.0
    %390 = vmatprep.subr.mxu0 %v49
    %391 = vmatpush1.msra.mxu0 %v48
    %392 = vmatprep.subr.mxu0 %v47
    %393 = vmatpush1.msra.mxu0 %v46
    %394 = vmatprep.subr.mxu0 %v45
    %395 = vmatpush1.msra.mxu0 %v44
    %396 = vmatprep.subr.mxu0 %v43
    %397 = vmatpush1.msra.mxu0 %v42
    %398 = vmatprep.subr.mxu0 0.0
    %399 = vmatpush2.msra.mxu0 0.0
    %400 = vmatprep.subr.mxu0 0.0
    %401 = vmatpush2.msra.mxu0 0.0
    %402 = vmatprep.subr.mxu0 0.0
    %403 = vmatpush2.msra.mxu0 0.0
    %404 = vmatprep.subr.mxu0 0.0
    %405 = vmatpush2.msra.mxu0 0.0
    %406 = vmatprep.subr.mxu0 0.0
    %407 = vmatpush2.msra.mxu0 0.0
    %408 = vmatprep.subr.mxu0 0.0
    %409 = vmatpush2.msra.mxu0 0.0
    %410 = vmatprep.subr.mxu0 0.0
    %411 = vmatpush2.msra.mxu0 0.0
    %412 = vmatprep.subr.mxu0 0.0
    %413 = vmatpush2.msra.mxu0 0.0
    %414 = vmatprep.subr.mxu0 0.0
    %415 = vmatpush2.msra.mxu0 0.0
    %416 = vmatprep.subr.mxu0 0.0
    %417 = vmatpush2.msra.mxu0 0.0
    %418 = vmatprep.subr.mxu0 0.0
    %419 = vmatpush2.msra.mxu0 0.0
    %420 = vmatprep.subr.mxu0 0.0
    %421 = vmatpush2.msra.mxu0 0.0
    %422 = vmatprep.subr.mxu0 0.0
    %423 = vmatpush2.msra.mxu0 0.0
    %424 = vmatprep.subr.mxu0 0.0
    %425 = vmatpush2.msra.mxu0 0.0
    %426 = vmatprep.subr.mxu0 0.0
    %427 = vmatpush2.msra.mxu0 0.0
    %428 = vmatprep.subr.mxu0 0.0
    %429 = vmatpush2.msra.mxu0 0.0
    %430 = vmatprep.mubr.f32.mxu0 0.0
    %431 = vmatmul.mubr.f32.gmra.mxu0 %v364
    %v432 = vpop.f32.mrf.mxu0
    %v433 = vadd.f32 0.0, %v432
    %v434 = vpop.f32.mrf.mxu0
    %v435 = vadd.f32 0.0, %v434
    %436 = vdwg.mxu0
    %v437 = vadd.f32 %v435, %v333
    %v438 = vadd.f32 %v437, %v59
    %v439 = vxor.u32 %v438, 2147483648
    %v440 = vmul.f32 %v439, 1.442695
    %v441 = vpow.pop %v440
    %v442 = vadd.f32 %v441, 1.0
    %v443 = vrcp.pop %v442
    %v444 = vmul.f32 1.0, %v443
    %v445 = vtanh.pop %v438
    %v446 = vmul.f32 %v444, %v254
    %448 = vrot.lane.b32.xlu0 %v445, 32
    %v449 = vpop.permute.xlu0 %448
    %v451 = vmul.f32 %v444, %v449
    %453 = vrot.lane.b32.xlu0 %v451, 32
    %v454 = vpop.permute.xlu0 %453
    %v456 = vadd.f32 %v446, %v454
    %v457 = vtanh.pop %v456
    %459 = vrot.lane.b32.xlu0 %v457, 32
    %v460 = vpop.permute.xlu0 %459
    %v462 = vmul.f32 %v444, %v460
    %464 = vrot.lane.b32.xlu0 %v462, 64
    %v465 = vpop.permute.xlu0 %464
    %v466 = vsel %vm161, %v465, 0
    %468 = vmatprep.subr.mxu0 0.0
    %469 = vmatpush1.msra.mxu0 0.0
    %470 = vmatprep.subr.mxu0 0.0
    %471 = vmatpush1.msra.mxu0 0.0
    %472 = vmatprep.subr.mxu0 0.0
    %473 = vmatpush1.msra.mxu0 0.0
    %474 = vmatprep.subr.mxu0 0.0
    %475 = vmatpush1.msra.mxu0 0.0
    %476 = vmatprep.subr.mxu0 0.0
    %477 = vmatpush1.msra.mxu0 0.0
    %478 = vmatprep.subr.mxu0 0.0
    %479 = vmatpush1.msra.mxu0 0.0
    %480 = vmatprep.subr.mxu0 0.0
    %481 = vmatpush1.msra.mxu0 0.0
    %482 = vmatprep.subr.mxu0 0.0
    %483 = vmatpush1.msra.mxu0 0.0
    %484 = vmatprep.subr.mxu0 0.0
    %485 = vmatpush1.msra.mxu0 0.0
    %486 = vmatprep.subr.mxu0 0.0
    %487 = vmatpush1.msra.mxu0 0.0
    %488 = vmatprep.subr.mxu0 0.0
    %489 = vmatpush1.msra.mxu0 0.0
    %490 = vmatprep.subr.mxu0 0.0
    %491 = vmatpush1.msra.mxu0 0.0
    %492 = vmatprep.subr.mxu0 0.0
    %493 = vmatpush1.msra.mxu0 %v53
    %494 = vmatprep.subr.mxu0 0.0
    %495 = vmatpush1.msra.mxu0 %v52
    %496 = vmatprep.subr.mxu0 0.0
    %497 = vmatpush1.msra.mxu0 %v51
    %498 = vmatprep.subr.mxu0 0.0
    %499 = vmatpush1.msra.mxu0 %v50
    %500 = vmatprep.subr.mxu0 0.0
    %501 = vmatpush2.msra.mxu0 0.0
    %502 = vmatprep.subr.mxu0 0.0
    %503 = vmatpush2.msra.mxu0 0.0
    %504 = vmatprep.subr.mxu0 0.0
    %505 = vmatpush2.msra.mxu0 0.0
    %506 = vmatprep.subr.mxu0 0.0
    %507 = vmatpush2.msra.mxu0 0.0
    %508 = vmatprep.subr.mxu0 0.0
    %509 = vmatpush2.msra.mxu0 0.0
    %510 = vmatprep.subr.mxu0 0.0
    %511 = vmatpush2.msra.mxu0 0.0
    %512 = vmatprep.subr.mxu0 0.0
    %513 = vmatpush2.msra.mxu0 0.0
    %514 = vmatprep.subr.mxu0 0.0
    %515 = vmatpush2.msra.mxu0 0.0
    %516 = vmatprep.subr.mxu0 0.0
    %517 = vmatpush2.msra.mxu0 0.0
    %518 = vmatprep.subr.mxu0 0.0
    %519 = vmatpush2.msra.mxu0 0.0
    %520 = vmatprep.subr.mxu0 0.0
    %521 = vmatpush2.msra.mxu0 0.0
    %522 = vmatprep.subr.mxu0 0.0
    %523 = vmatpush2.msra.mxu0 0.0
    %524 = vmatprep.subr.mxu0 0.0
    %525 = vmatpush2.msra.mxu0 0.0
    %526 = vmatprep.subr.mxu0 0.0
    %527 = vmatpush2.msra.mxu0 0.0
    %528 = vmatprep.subr.mxu0 0.0
    %529 = vmatpush2.msra.mxu0 0.0
    %530 = vmatprep.subr.mxu0 0.0
    %531 = vmatpush2.msra.mxu0 0.0
    %532 = vmatprep.mubr.f32.mxu0 0.0
    %533 = vmatmul.mubr.f32.gmra.mxu0 %v466
    %v534 = vpop.f32.mrf.mxu0
    %v535 = vadd.f32 0.0, %v534
    %v536 = vpop.f32.mrf.mxu0
    %537 = vdwg.mxu0
    %v538 = vadd.f32 %v127, %v433
    %v539 = vxor.u32 %v538, 2147483648
    %v540 = vmul.f32 %v539, 1.442695
    %v541 = vpow.pop %v540
    %v542 = vadd.f32 %v541, 1.0
    %v543 = vrcp.pop %v542
    %v544 = vmul.f32 1.0, %v543
    %v545 = vtanh.pop %v538
    %v546 = vmul.f32 %v544, %v354
    %548 = vrot.lane.b32.xlu0 %v545, 32
    %v549 = vpop.permute.xlu0 %548
    %v551 = vmul.f32 %v544, %v549
    %553 = vrot.lane.b32.xlu0 %v551, 32
    %v554 = vpop.permute.xlu0 %553
    %v556 = vadd.f32 %v546, %v554
    %v557 = vtanh.pop %v556
    %559 = vrot.lane.b32.xlu0 %v557, 32
    %v560 = vpop.permute.xlu0 %559
    %v562 = vmul.f32 %v544, %v560
    %564 = vrot.lane.b32.xlu0 %v562, 64
    %v565 = vpop.permute.xlu0 %564
    %v566 = vsel %vm161, %v565, 0
    %568 = vmatprep.subr.mxu0 0.0
    %569 = vmatpush1.msra.mxu0 0.0
    %570 = vmatprep.subr.mxu0 0.0
    %571 = vmatpush1.msra.mxu0 0.0
    %572 = vmatprep.subr.mxu0 0.0
    %573 = vmatpush1.msra.mxu0 0.0
    %574 = vmatprep.subr.mxu0 0.0
    %575 = vmatpush1.msra.mxu0 0.0
    %576 = vmatprep.subr.mxu0 0.0
    %577 = vmatpush1.msra.mxu0 0.0
    %578 = vmatprep.subr.mxu0 0.0
    %579 = vmatpush1.msra.mxu0 0.0
    %580 = vmatprep.subr.mxu0 0.0
    %581 = vmatpush1.msra.mxu0 0.0
    %582 = vmatprep.subr.mxu0 0.0
    %583 = vmatpush1.msra.mxu0 0.0
    %584 = vmatprep.subr.mxu0 0.0
    %585 = vmatpush1.msra.mxu0 0.0
    %586 = vmatprep.subr.mxu0 0.0
    %587 = vmatpush1.msra.mxu0 0.0
    %588 = vmatprep.subr.mxu0 0.0
    %589 = vmatpush1.msra.mxu0 0.0
    %590 = vmatprep.subr.mxu0 0.0
    %591 = vmatpush1.msra.mxu0 0.0
    %592 = vmatprep.subr.mxu0 %v49
    %593 = vmatpush1.msra.mxu0 %v48
    %594 = vmatprep.subr.mxu0 %v47
    %595 = vmatpush1.msra.mxu0 %v46
    %596 = vmatprep.subr.mxu0 %v45
    %597 = vmatpush1.msra.mxu0 %v44
    %598 = vmatprep.subr.mxu0 %v43
    %599 = vmatpush1.msra.mxu0 %v42
    %600 = vmatprep.subr.mxu0 0.0
    %601 = vmatpush2.msra.mxu0 0.0
    %602 = vmatprep.subr.mxu0 0.0
    %603 = vmatpush2.msra.mxu0 0.0
    %604 = vmatprep.subr.mxu0 0.0
    %605 = vmatpush2.msra.mxu0 0.0
    %606 = vmatprep.subr.mxu0 0.0
    %607 = vmatpush2.msra.mxu0 0.0
    %608 = vmatprep.subr.mxu0 0.0
    %609 = vmatpush2.msra.mxu0 0.0
    %610 = vmatprep.subr.mxu0 0.0
    %611 = vmatpush2.msra.mxu0 0.0
    %612 = vmatprep.subr.mxu0 0.0
    %613 = vmatpush2.msra.mxu0 0.0
    %614 = vmatprep.subr.mxu0 0.0
    %615 = vmatpush2.msra.mxu0 0.0
    %616 = vmatprep.subr.mxu0 0.0
    %617 = vmatpush2.msra.mxu0 0.0
    %618 = vmatprep.subr.mxu0 0.0
    %619 = vmatpush2.msra.mxu0 0.0
    %620 = vmatprep.subr.mxu0 0.0
    %621 = vmatpush2.msra.mxu0 0.0
    %622 = vmatprep.subr.mxu0 0.0
    %623 = vmatpush2.msra.mxu0 0.0
    %624 = vmatprep.subr.mxu0 0.0
    %625 = vmatpush2.msra.mxu0 0.0
    %626 = vmatprep.subr.mxu0 0.0
    %627 = vmatpush2.msra.mxu0 0.0
    %628 = vmatprep.subr.mxu0 0.0
    %629 = vmatpush2.msra.mxu0 0.0
    %630 = vmatprep.subr.mxu0 0.0
    %631 = vmatpush2.msra.mxu0 0.0
    %632 = vmatprep.mubr.f32.mxu0 0.0
    %633 = vmatmul.mubr.f32.gmra.mxu0 %v566
    %v634 = vpop.f32.mrf.mxu0
    %v635 = vadd.f32 0.0, %v634
    %v636 = vpop.f32.mrf.mxu0
    %v637 = vadd.f32 0.0, %v636
    %638 = vdwg.mxu0
    %v639 = vadd.f32 %v637, %v535
    %v640 = vadd.f32 %v639, %v59
    %v641 = vxor.u32 %v640, 2147483648
    %v642 = vmul.f32 %v641, 1.442695
    %v643 = vpow.pop %v642
    %v644 = vadd.f32 %v643, 1.0
    %v645 = vrcp.pop %v644
    %v646 = vmul.f32 1.0, %v645
    %v647 = vtanh.pop %v640
    %v648 = vmul.f32 %v646, %v456
    %650 = vrot.lane.b32.xlu0 %v647, 32
    %v651 = vpop.permute.xlu0 %650
    %v653 = vmul.f32 %v646, %v651
    %655 = vrot.lane.b32.xlu0 %v653, 32
    %v656 = vpop.permute.xlu0 %655
    %v658 = vadd.f32 %v648, %v656
    %v659 = vtanh.pop %v658
    %661 = vrot.lane.b32.xlu0 %v659, 32
    %v662 = vpop.permute.xlu0 %661
    %v664 = vmul.f32 %v646, %v662
    %666 = vrot.lane.b32.xlu0 %v664, 64
    %v667 = vpop.permute.xlu0 %666
    %v668 = vsel %vm161, %v667, 0
    %670 = vmatprep.subr.mxu0 0.0
    %671 = vmatpush1.msra.mxu0 0.0
    %672 = vmatprep.subr.mxu0 0.0
    %673 = vmatpush1.msra.mxu0 0.0
    %674 = vmatprep.subr.mxu0 0.0
    %675 = vmatpush1.msra.mxu0 0.0
    %676 = vmatprep.subr.mxu0 0.0
    %677 = vmatpush1.msra.mxu0 0.0
    %678 = vmatprep.subr.mxu0 0.0
    %679 = vmatpush1.msra.mxu0 0.0
    %680 = vmatprep.subr.mxu0 0.0
    %681 = vmatpush1.msra.mxu0 0.0
    %682 = vmatprep.subr.mxu0 0.0
    %683 = vmatpush1.msra.mxu0 0.0
    %684 = vmatprep.subr.mxu0 0.0
    %685 = vmatpush1.msra.mxu0 0.0
    %686 = vmatprep.subr.mxu0 0.0
    %687 = vmatpush1.msra.mxu0 0.0
    %688 = vmatprep.subr.mxu0 0.0
    %689 = vmatpush1.msra.mxu0 0.0
    %690 = vmatprep.subr.mxu0 0.0
    %691 = vmatpush1.msra.mxu0 0.0
    %692 = vmatprep.subr.mxu0 0.0
    %693 = vmatpush1.msra.mxu0 0.0
    %694 = vmatprep.subr.mxu0 0.0
    %695 = vmatpush1.msra.mxu0 %v53
    %696 = vmatprep.subr.mxu0 0.0
    %697 = vmatpush1.msra.mxu0 %v52
    %698 = vmatprep.subr.mxu0 0.0
    %699 = vmatpush1.msra.mxu0 %v51
    %700 = vmatprep.subr.mxu0 0.0
    %701 = vmatpush1.msra.mxu0 %v50
    %702 = vmatprep.subr.mxu0 0.0
    %703 = vmatpush2.msra.mxu0 0.0
    %704 = vmatprep.subr.mxu0 0.0
    %705 = vmatpush2.msra.mxu0 0.0
    %706 = vmatprep.subr.mxu0 0.0
    %707 = vmatpush2.msra.mxu0 0.0
    %708 = vmatprep.subr.mxu0 0.0
    %709 = vmatpush2.msra.mxu0 0.0
    %710 = vmatprep.subr.mxu0 0.0
    %711 = vmatpush2.msra.mxu0 0.0
    %712 = vmatprep.subr.mxu0 0.0
    %713 = vmatpush2.msra.mxu0 0.0
    %714 = vmatprep.subr.mxu0 0.0
    %715 = vmatpush2.msra.mxu0 0.0
    %716 = vmatprep.subr.mxu0 0.0
    %717 = vmatpush2.msra.mxu0 0.0
    %718 = vmatprep.subr.mxu0 0.0
    %719 = vmatpush2.msra.mxu0 0.0
    %720 = vmatprep.subr.mxu0 0.0
    %721 = vmatpush2.msra.mxu0 0.0
    %722 = vmatprep.subr.mxu0 0.0
    %723 = vmatpush2.msra.mxu0 0.0
    %724 = vmatprep.subr.mxu0 0.0
    %725 = vmatpush2.msra.mxu0 0.0
    %726 = vmatprep.subr.mxu0 0.0
    %727 = vmatpush2.msra.mxu0 0.0
    %728 = vmatprep.subr.mxu0 0.0
    %729 = vmatpush2.msra.mxu0 0.0
    %730 = vmatprep.subr.mxu0 0.0
    %731 = vmatpush2.msra.mxu0 0.0
    %732 = vmatprep.subr.mxu0 0.0
    %733 = vmatpush2.msra.mxu0 0.0
    %734 = vmatprep.mubr.f32.mxu0 0.0
    %735 = vmatmul.mubr.f32.gmra.mxu0 %v668
    %v736 = vpop.f32.mrf.mxu0
    %v737 = vadd.f32 0.0, %v736
    %v738 = vpop.f32.mrf.mxu0
    %739 = vdwg.mxu0
    %v740 = vadd.f32 %v128, %v635
    %v741 = vxor.u32 %v740, 2147483648
    %v742 = vmul.f32 %v741, 1.442695
    %v743 = vpow.pop %v742
    %v744 = vadd.f32 %v743, 1.0
    %v745 = vrcp.pop %v744
    %v746 = vmul.f32 1.0, %v745
    %v747 = vtanh.pop %v740
    %v748 = vmul.f32 %v746, %v556
    %750 = vrot.lane.b32.xlu0 %v747, 32
    %v751 = vpop.permute.xlu0 %750
    %v753 = vmul.f32 %v746, %v751
    %755 = vrot.lane.b32.xlu0 %v753, 32
    %v756 = vpop.permute.xlu0 %755
    %v758 = vadd.f32 %v748, %v756
    %v759 = vtanh.pop %v758
    %761 = vrot.lane.b32.xlu0 %v759, 32
    %v762 = vpop.permute.xlu0 %761
    %v764 = vmul.f32 %v746, %v762
    %766 = vrot.lane.b32.xlu0 %v764, 64
    %v767 = vpop.permute.xlu0 %766
    %v768 = vsel %vm161, %v767, 0
    %770 = vmatprep.subr.mxu0 0.0
    %771 = vmatpush1.msra.mxu0 0.0
    %772 = vmatprep.subr.mxu0 0.0
    %773 = vmatpush1.msra.mxu0 0.0
    %774 = vmatprep.subr.mxu0 0.0
    %775 = vmatpush1.msra.mxu0 0.0
    %776 = vmatprep.subr.mxu0 0.0
    %777 = vmatpush1.msra.mxu0 0.0
    %778 = vmatprep.subr.mxu0 0.0
    %779 = vmatpush1.msra.mxu0 0.0
    %780 = vmatprep.subr.mxu0 0.0
    %781 = vmatpush1.msra.mxu0 0.0
    %782 = vmatprep.subr.mxu0 0.0
    %783 = vmatpush1.msra.mxu0 0.0
    %784 = vmatprep.subr.mxu0 0.0
    %785 = vmatpush1.msra.mxu0 0.0
    %786 = vmatprep.subr.mxu0 0.0
    %787 = vmatpush1.msra.mxu0 0.0
    %788 = vmatprep.subr.mxu0 0.0
    %789 = vmatpush1.msra.mxu0 0.0
    %790 = vmatprep.subr.mxu0 0.0
    %791 = vmatpush1.msra.mxu0 0.0
    %792 = vmatprep.subr.mxu0 0.0
    %793 = vmatpush1.msra.mxu0 0.0
    %794 = vmatprep.subr.mxu0 %v49
    %795 = vmatpush1.msra.mxu0 %v48
    %796 = vmatprep.subr.mxu0 %v47
    %797 = vmatpush1.msra.mxu0 %v46
    %798 = vmatprep.subr.mxu0 %v45
    %799 = vmatpush1.msra.mxu0 %v44
    %800 = vmatprep.subr.mxu0 %v43
    %801 = vmatpush1.msra.mxu0 %v42
    %802 = vmatprep.subr.mxu0 0.0
    %803 = vmatpush2.msra.mxu0 0.0
    %804 = vmatprep.subr.mxu0 0.0
    %805 = vmatpush2.msra.mxu0 0.0
    %806 = vmatprep.subr.mxu0 0.0
    %807 = vmatpush2.msra.mxu0 0.0
    %808 = vmatprep.subr.mxu0 0.0
    %809 = vmatpush2.msra.mxu0 0.0
    %810 = vmatprep.subr.mxu0 0.0
    %811 = vmatpush2.msra.mxu0 0.0
    %812 = vmatprep.subr.mxu0 0.0
    %813 = vmatpush2.msra.mxu0 0.0
    %814 = vmatprep.subr.mxu0 0.0
    %815 = vmatpush2.msra.mxu0 0.0
    %816 = vmatprep.subr.mxu0 0.0
    %817 = vmatpush2.msra.mxu0 0.0
    %818 = vmatprep.subr.mxu0 0.0
    %819 = vmatpush2.msra.mxu0 0.0
    %820 = vmatprep.subr.mxu0 0.0
    %821 = vmatpush2.msra.mxu0 0.0
    %822 = vmatprep.subr.mxu0 0.0
    %823 = vmatpush2.msra.mxu0 0.0
    %824 = vmatprep.subr.mxu0 0.0
    %825 = vmatpush2.msra.mxu0 0.0
    %826 = vmatprep.subr.mxu0 0.0
    %827 = vmatpush2.msra.mxu0 0.0
    %828 = vmatprep.subr.mxu0 0.0
    %829 = vmatpush2.msra.mxu0 0.0
    %830 = vmatprep.subr.mxu0 0.0
    %831 = vmatpush2.msra.mxu0 0.0
    %832 = vmatprep.subr.mxu0 0.0
    %833 = vmatpush2.msra.mxu0 0.0
    %834 = vmatprep.mubr.f32.mxu0 0.0
    %835 = vmatmul.mubr.f32.gmra.mxu0 %v768
    %v836 = vpop.f32.mrf.mxu0
    %v837 = vadd.f32 0.0, %v836
    %v838 = vpop.f32.mrf.mxu0
    %v839 = vadd.f32 0.0, %v838
    %840 = vdwg.mxu0
    %v841 = vadd.f32 %v839, %v737
    %v842 = vadd.f32 %v841, %v59
    %v843 = vxor.u32 %v842, 2147483648
    %v844 = vmul.f32 %v843, 1.442695
    %v845 = vpow.pop %v844
    %v846 = vadd.f32 %v845, 1.0
    %v847 = vrcp.pop %v846
    %v848 = vmul.f32 1.0, %v847
    %v849 = vtanh.pop %v842
    %v850 = vmul.f32 %v848, %v658
    %852 = vrot.lane.b32.xlu0 %v849, 32
    %v853 = vpop.permute.xlu0 %852
    %v855 = vmul.f32 %v848, %v853
    %857 = vrot.lane.b32.xlu0 %v855, 32
    %v858 = vpop.permute.xlu0 %857
    %v860 = vadd.f32 %v850, %v858
    %v861 = vtanh.pop %v860
    %863 = vrot.lane.b32.xlu0 %v861, 32
    %v864 = vpop.permute.xlu0 %863
    %v866 = vmul.f32 %v848, %v864
    %868 = vrot.lane.b32.xlu0 %v866, 64
    %v869 = vpop.permute.xlu0 %868
    %v870 = vsel %vm161, %v869, 0
    %872 = vmatprep.subr.mxu0 0.0
    %873 = vmatpush1.msra.mxu0 0.0
    %874 = vmatprep.subr.mxu0 0.0
    %875 = vmatpush1.msra.mxu0 0.0
    %876 = vmatprep.subr.mxu0 0.0
    %877 = vmatpush1.msra.mxu0 0.0
    %878 = vmatprep.subr.mxu0 0.0
    %879 = vmatpush1.msra.mxu0 0.0
    %880 = vmatprep.subr.mxu0 0.0
    %881 = vmatpush1.msra.mxu0 0.0
    %882 = vmatprep.subr.mxu0 0.0
    %883 = vmatpush1.msra.mxu0 0.0
    %884 = vmatprep.subr.mxu0 0.0
    %885 = vmatpush1.msra.mxu0 0.0
    %886 = vmatprep.subr.mxu0 0.0
    %887 = vmatpush1.msra.mxu0 0.0
    %888 = vmatprep.subr.mxu0 0.0
    %889 = vmatpush1.msra.mxu0 0.0
    %890 = vmatprep.subr.mxu0 0.0
    %891 = vmatpush1.msra.mxu0 0.0
    %892 = vmatprep.subr.mxu0 0.0
    %893 = vmatpush1.msra.mxu0 0.0
    %894 = vmatprep.subr.mxu0 0.0
    %895 = vmatpush1.msra.mxu0 0.0
    %896 = vmatprep.subr.mxu0 0.0
    %897 = vmatpush1.msra.mxu0 %v53
    %898 = vmatprep.subr.mxu0 0.0
    %899 = vmatpush1.msra.mxu0 %v52
    %900 = vmatprep.subr.mxu0 0.0
    %901 = vmatpush1.msra.mxu0 %v51
    %902 = vmatprep.subr.mxu0 0.0
    %903 = vmatpush1.msra.mxu0 %v50
    %904 = vmatprep.subr.mxu0 0.0
    %905 = vmatpush2.msra.mxu0 0.0
    %906 = vmatprep.subr.mxu0 0.0
    %907 = vmatpush2.msra.mxu0 0.0
    %908 = vmatprep.subr.mxu0 0.0
    %909 = vmatpush2.msra.mxu0 0.0
    %910 = vmatprep.subr.mxu0 0.0
    %911 = vmatpush2.msra.mxu0 0.0
    %912 = vmatprep.subr.mxu0 0.0
    %913 = vmatpush2.msra.mxu0 0.0
    %914 = vmatprep.subr.mxu0 0.0
    %915 = vmatpush2.msra.mxu0 0.0
    %916 = vmatprep.subr.mxu0 0.0
    %917 = vmatpush2.msra.mxu0 0.0
    %918 = vmatprep.subr.mxu0 0.0
    %919 = vmatpush2.msra.mxu0 0.0
    %920 = vmatprep.subr.mxu0 0.0
    %921 = vmatpush2.msra.mxu0 0.0
    %922 = vmatprep.subr.mxu0 0.0
    %923 = vmatpush2.msra.mxu0 0.0
    %924 = vmatprep.subr.mxu0 0.0
    %925 = vmatpush2.msra.mxu0 0.0
    %926 = vmatprep.subr.mxu0 0.0
    %927 = vmatpush2.msra.mxu0 0.0
    %928 = vmatprep.subr.mxu0 0.0
    %929 = vmatpush2.msra.mxu0 0.0
    %930 = vmatprep.subr.mxu0 0.0
    %931 = vmatpush2.msra.mxu0 0.0
    %932 = vmatprep.subr.mxu0 0.0
    %933 = vmatpush2.msra.mxu0 0.0
    %934 = vmatprep.subr.mxu0 0.0
    %935 = vmatpush2.msra.mxu0 0.0
    %936 = vmatprep.mubr.f32.mxu0 0.0
    %937 = vmatmul.mubr.f32.gmra.mxu0 %v870
    %v938 = vpop.f32.mrf.mxu0
    %v939 = vadd.f32 0.0, %v938
    %v940 = vpop.f32.mrf.mxu0
    %941 = vdwg.mxu0
    %v942 = vadd.f32 %v129, %v837
    %v943 = vxor.u32 %v942, 2147483648
    %v944 = vmul.f32 %v943, 1.442695
    %v945 = vpow.pop %v944
    %v946 = vadd.f32 %v945, 1.0
    %v947 = vrcp.pop %v946
    %v948 = vmul.f32 1.0, %v947
    %v949 = vtanh.pop %v942
    %v950 = vmul.f32 %v948, %v758
    %952 = vrot.lane.b32.xlu0 %v949, 32
    %v953 = vpop.permute.xlu0 %952
    %v955 = vmul.f32 %v948, %v953
    %957 = vrot.lane.b32.xlu0 %v955, 32
    %v958 = vpop.permute.xlu0 %957
    %v960 = vadd.f32 %v950, %v958
    %v961 = vtanh.pop %v960
    %963 = vrot.lane.b32.xlu0 %v961, 32
    %v964 = vpop.permute.xlu0 %963
    %v966 = vmul.f32 %v948, %v964
    %968 = vrot.lane.b32.xlu0 %v966, 64
    %v969 = vpop.permute.xlu0 %968
    %v970 = vsel %vm161, %v969, 0
    %972 = vmatprep.subr.mxu0 0.0
    %973 = vmatpush1.msra.mxu0 0.0
    %974 = vmatprep.subr.mxu0 0.0
    %975 = vmatpush1.msra.mxu0 0.0
    %976 = vmatprep.subr.mxu0 0.0
    %977 = vmatpush1.msra.mxu0 0.0
    %978 = vmatprep.subr.mxu0 0.0
    %979 = vmatpush1.msra.mxu0 0.0
    %980 = vmatprep.subr.mxu0 0.0
    %981 = vmatpush1.msra.mxu0 0.0
    %982 = vmatprep.subr.mxu0 0.0
    %983 = vmatpush1.msra.mxu0 0.0
    %984 = vmatprep.subr.mxu0 0.0
    %985 = vmatpush1.msra.mxu0 0.0
    %986 = vmatprep.subr.mxu0 0.0
    %987 = vmatpush1.msra.mxu0 0.0
    %988 = vmatprep.subr.mxu0 0.0
    %989 = vmatpush1.msra.mxu0 0.0
    %990 = vmatprep.subr.mxu0 0.0
    %991 = vmatpush1.msra.mxu0 0.0
    %992 = vmatprep.subr.mxu0 0.0
    %993 = vmatpush1.msra.mxu0 0.0
    %994 = vmatprep.subr.mxu0 0.0
    %995 = vmatpush1.msra.mxu0 0.0
    %996 = vmatprep.subr.mxu0 %v49
    %997 = vmatpush1.msra.mxu0 %v48
    %998 = vmatprep.subr.mxu0 %v47
    %999 = vmatpush1.msra.mxu0 %v46
    %1000 = vmatprep.subr.mxu0 %v45
    %1001 = vmatpush1.msra.mxu0 %v44
    %1002 = vmatprep.subr.mxu0 %v43
    %1003 = vmatpush1.msra.mxu0 %v42
    %1004 = vmatprep.subr.mxu0 0.0
    %1005 = vmatpush2.msra.mxu0 0.0
    %1006 = vmatprep.subr.mxu0 0.0
    %1007 = vmatpush2.msra.mxu0 0.0
    %1008 = vmatprep.subr.mxu0 0.0
    %1009 = vmatpush2.msra.mxu0 0.0
    %1010 = vmatprep.subr.mxu0 0.0
    %1011 = vmatpush2.msra.mxu0 0.0
    %1012 = vmatprep.subr.mxu0 0.0
    %1013 = vmatpush2.msra.mxu0 0.0
    %1014 = vmatprep.subr.mxu0 0.0
    %1015 = vmatpush2.msra.mxu0 0.0
    %1016 = vmatprep.subr.mxu0 0.0
    %1017 = vmatpush2.msra.mxu0 0.0
    %1018 = vmatprep.subr.mxu0 0.0
    %1019 = vmatpush2.msra.mxu0 0.0
    %1020 = vmatprep.subr.mxu0 0.0
    %1021 = vmatpush2.msra.mxu0 0.0
    %1022 = vmatprep.subr.mxu0 0.0
    %1023 = vmatpush2.msra.mxu0 0.0
    %1024 = vmatprep.subr.mxu0 0.0
    %1025 = vmatpush2.msra.mxu0 0.0
    %1026 = vmatprep.subr.mxu0 0.0
    %1027 = vmatpush2.msra.mxu0 0.0
    %1028 = vmatprep.subr.mxu0 0.0
    %1029 = vmatpush2.msra.mxu0 0.0
    %1030 = vmatprep.subr.mxu0 0.0
    %1031 = vmatpush2.msra.mxu0 0.0
    %1032 = vmatprep.subr.mxu0 0.0
    %1033 = vmatpush2.msra.mxu0 0.0
    %1034 = vmatprep.subr.mxu0 0.0
    %1035 = vmatpush2.msra.mxu0 0.0
    %1036 = vmatprep.mubr.f32.mxu0 0.0
    %1037 = vmatmul.mubr.f32.gmra.mxu0 %v970
    %v1038 = vpop.f32.mrf.mxu0
    %v1039 = vadd.f32 0.0, %v1038
    %v1040 = vpop.f32.mrf.mxu0
    %v1041 = vadd.f32 0.0, %v1040
    %1042 = vdwg.mxu0
    %v1043 = vadd.f32 %v1041, %v939
    %v1044 = vadd.f32 %v1043, %v59
    %v1045 = vxor.u32 %v1044, 2147483648
    %v1046 = vmul.f32 %v1045, 1.442695
    %v1047 = vpow.pop %v1046
    %v1048 = vadd.f32 %v1047, 1.0
    %v1049 = vrcp.pop %v1048
    %v1050 = vmul.f32 1.0, %v1049
    %v1051 = vtanh.pop %v1044
    %v1052 = vmul.f32 %v1050, %v860
    %1054 = vrot.lane.b32.xlu0 %v1051, 32
    %v1055 = vpop.permute.xlu0 %1054
    %v1057 = vmul.f32 %v1050, %v1055
    %1059 = vrot.lane.b32.xlu0 %v1057, 32
    %v1060 = vpop.permute.xlu0 %1059
    %v1062 = vadd.f32 %v1052, %v1060
    %v1063 = vtanh.pop %v1062
    %1065 = vrot.lane.b32.xlu0 %v1063, 32
    %v1066 = vpop.permute.xlu0 %1065
    %v1068 = vmul.f32 %v1050, %v1066
    %1070 = vrot.lane.b32.xlu0 %v1068, 64
    %v1071 = vpop.permute.xlu0 %1070
    %v1072 = vsel %vm161, %v1071, 0
    %1074 = vmatprep.subr.mxu0 0.0
    %1075 = vmatpush1.msra.mxu0 0.0
    %1076 = vmatprep.subr.mxu0 0.0
    %1077 = vmatpush1.msra.mxu0 0.0
    %1078 = vmatprep.subr.mxu0 0.0
    %1079 = vmatpush1.msra.mxu0 0.0
    %1080 = vmatprep.subr.mxu0 0.0
    %1081 = vmatpush1.msra.mxu0 0.0
    %1082 = vmatprep.subr.mxu0 0.0
    %1083 = vmatpush1.msra.mxu0 0.0
    %1084 = vmatprep.subr.mxu0 0.0
    %1085 = vmatpush1.msra.mxu0 0.0
    %1086 = vmatprep.subr.mxu0 0.0
    %1087 = vmatpush1.msra.mxu0 0.0
    %1088 = vmatprep.subr.mxu0 0.0
    %1089 = vmatpush1.msra.mxu0 0.0
    %1090 = vmatprep.subr.mxu0 0.0
    %1091 = vmatpush1.msra.mxu0 0.0
    %1092 = vmatprep.subr.mxu0 0.0
    %1093 = vmatpush1.msra.mxu0 0.0
    %1094 = vmatprep.subr.mxu0 0.0
    %1095 = vmatpush1.msra.mxu0 0.0
    %1096 = vmatprep.subr.mxu0 0.0
    %1097 = vmatpush1.msra.mxu0 0.0
    %1098 = vmatprep.subr.mxu0 0.0
    %1099 = vmatpush1.msra.mxu0 %v53
    %1100 = vmatprep.subr.mxu0 0.0
    %1101 = vmatpush1.msra.mxu0 %v52
    %1102 = vmatprep.subr.mxu0 0.0
    %1103 = vmatpush1.msra.mxu0 %v51
    %1104 = vmatprep.subr.mxu0 0.0
    %1105 = vmatpush1.msra.mxu0 %v50
    %1106 = vmatprep.subr.mxu0 0.0
    %1107 = vmatpush2.msra.mxu0 0.0
    %1108 = vmatprep.subr.mxu0 0.0
    %1109 = vmatpush2.msra.mxu0 0.0
    %1110 = vmatprep.subr.mxu0 0.0
    %1111 = vmatpush2.msra.mxu0 0.0
    %1112 = vmatprep.subr.mxu0 0.0
    %1113 = vmatpush2.msra.mxu0 0.0
    %1114 = vmatprep.subr.mxu0 0.0
    %1115 = vmatpush2.msra.mxu0 0.0
    %1116 = vmatprep.subr.mxu0 0.0
    %1117 = vmatpush2.msra.mxu0 0.0
    %1118 = vmatprep.subr.mxu0 0.0
    %1119 = vmatpush2.msra.mxu0 0.0
    %1120 = vmatprep.subr.mxu0 0.0
    %1121 = vmatpush2.msra.mxu0 0.0
    %1122 = vmatprep.subr.mxu0 0.0
    %1123 = vmatpush2.msra.mxu0 0.0
    %1124 = vmatprep.subr.mxu0 0.0
    %1125 = vmatpush2.msra.mxu0 0.0
    %1126 = vmatprep.subr.mxu0 0.0
    %1127 = vmatpush2.msra.mxu0 0.0
    %1128 = vmatprep.subr.mxu0 0.0
    %1129 = vmatpush2.msra.mxu0 0.0
    %1130 = vmatprep.subr.mxu0 0.0
    %1131 = vmatpush2.msra.mxu0 0.0
    %1132 = vmatprep.subr.mxu0 0.0
    %1133 = vmatpush2.msra.mxu0 0.0
    %1134 = vmatprep.subr.mxu0 0.0
    %1135 = vmatpush2.msra.mxu0 0.0
    %1136 = vmatprep.subr.mxu0 0.0
    %1137 = vmatpush2.msra.mxu0 0.0
    %1138 = vmatprep.mubr.f32.mxu0 0.0
    %1139 = vmatmul.mubr.f32.gmra.mxu0 %v1072
    %v1140 = vpop.f32.mrf.mxu0
    %v1141 = vadd.f32 0.0, %v1140
    %v1142 = vpop.f32.mrf.mxu0
    %1143 = vdwg.mxu0
    %v1144 = vadd.f32 %v130, %v1039
    %v1145 = vxor.u32 %v1144, 2147483648
    %v1146 = vmul.f32 %v1145, 1.442695
    %v1147 = vpow.pop %v1146
    %v1148 = vadd.f32 %v1147, 1.0
    %v1149 = vrcp.pop %v1148
    %v1150 = vmul.f32 1.0, %v1149
    %v1151 = vtanh.pop %v1144
    %v1152 = vmul.f32 %v1150, %v960
    %1154 = vrot.lane.b32.xlu0 %v1151, 32
    %v1155 = vpop.permute.xlu0 %1154
    %v1157 = vmul.f32 %v1150, %v1155
    %1159 = vrot.lane.b32.xlu0 %v1157, 32
    %v1160 = vpop.permute.xlu0 %1159
    %v1162 = vadd.f32 %v1152, %v1160
    %v1163 = vtanh.pop %v1162
    %1165 = vrot.lane.b32.xlu0 %v1163, 32
    %v1166 = vpop.permute.xlu0 %1165
    %v1168 = vmul.f32 %v1150, %v1166
    %1170 = vrot.lane.b32.xlu0 %v1168, 64
    %v1171 = vpop.permute.xlu0 %1170
    %v1172 = vsel %vm161, %v1171, 0
    %1174 = vmatprep.subr.mxu0 0.0
    %1175 = vmatpush1.msra.mxu0 0.0
    %1176 = vmatprep.subr.mxu0 0.0
    %1177 = vmatpush1.msra.mxu0 0.0
    %1178 = vmatprep.subr.mxu0 0.0
    %1179 = vmatpush1.msra.mxu0 0.0
    %1180 = vmatprep.subr.mxu0 0.0
    %1181 = vmatpush1.msra.mxu0 0.0
    %1182 = vmatprep.subr.mxu0 0.0
    %1183 = vmatpush1.msra.mxu0 0.0
    %1184 = vmatprep.subr.mxu0 0.0
    %1185 = vmatpush1.msra.mxu0 0.0
    %1186 = vmatprep.subr.mxu0 0.0
    %1187 = vmatpush1.msra.mxu0 0.0
    %1188 = vmatprep.subr.mxu0 0.0
    %1189 = vmatpush1.msra.mxu0 0.0
    %1190 = vmatprep.subr.mxu0 0.0
    %1191 = vmatpush1.msra.mxu0 0.0
    %1192 = vmatprep.subr.mxu0 0.0
    %1193 = vmatpush1.msra.mxu0 0.0
    %1194 = vmatprep.subr.mxu0 0.0
    %1195 = vmatpush1.msra.mxu0 0.0
    %1196 = vmatprep.subr.mxu0 0.0
    %1197 = vmatpush1.msra.mxu0 0.0
    %1198 = vmatprep.subr.mxu0 %v49
    %1199 = vmatpush1.msra.mxu0 %v48
    %1200 = vmatprep.subr.mxu0 %v47
    %1201 = vmatpush1.msra.mxu0 %v46
    %1202 = vmatprep.subr.mxu0 %v45
    %1203 = vmatpush1.msra.mxu0 %v44
    %1204 = vmatprep.subr.mxu0 %v43
    %1205 = vmatpush1.msra.mxu0 %v42
    %1206 = vmatprep.subr.mxu0 0.0
    %1207 = vmatpush2.msra.mxu0 0.0
    %1208 = vmatprep.subr.mxu0 0.0
    %1209 = vmatpush2.msra.mxu0 0.0
    %1210 = vmatprep.subr.mxu0 0.0
    %1211 = vmatpush2.msra.mxu0 0.0
    %1212 = vmatprep.subr.mxu0 0.0
    %1213 = vmatpush2.msra.mxu0 0.0
    %1214 = vmatprep.subr.mxu0 0.0
    %1215 = vmatpush2.msra.mxu0 0.0
    %1216 = vmatprep.subr.mxu0 0.0
    %1217 = vmatpush2.msra.mxu0 0.0
    %1218 = vmatprep.subr.mxu0 0.0
    %1219 = vmatpush2.msra.mxu0 0.0
    %1220 = vmatprep.subr.mxu0 0.0
    %1221 = vmatpush2.msra.mxu0 0.0
    %1222 = vmatprep.subr.mxu0 0.0
    %1223 = vmatpush2.msra.mxu0 0.0
    %1224 = vmatprep.subr.mxu0 0.0
    %1225 = vmatpush2.msra.mxu0 0.0
    %1226 = vmatprep.subr.mxu0 0.0
    %1227 = vmatpush2.msra.mxu0 0.0
    %1228 = vmatprep.subr.mxu0 0.0
    %1229 = vmatpush2.msra.mxu0 0.0
    %1230 = vmatprep.subr.mxu0 0.0
    %1231 = vmatpush2.msra.mxu0 0.0
    %1232 = vmatprep.subr.mxu0 0.0
    %1233 = vmatpush2.msra.mxu0 0.0
    %1234 = vmatprep.subr.mxu0 0.0
    %1235 = vmatpush2.msra.mxu0 0.0
    %1236 = vmatprep.subr.mxu0 0.0
    %1237 = vmatpush2.msra.mxu0 0.0
    %1238 = vmatprep.mubr.f32.mxu0 0.0
    %1239 = vmatmul.mubr.f32.gmra.mxu0 %v1172
    %v1240 = vpop.f32.mrf.mxu0
    %v1241 = vadd.f32 0.0, %v1240
    %v1242 = vpop.f32.mrf.mxu0
    %v1243 = vadd.f32 0.0, %v1242
    %1244 = vdwg.mxu0
    %v1245 = vadd.f32 %v1243, %v1141
    %v1246 = vadd.f32 %v1245, %v59
    %v1247 = vxor.u32 %v1246, 2147483648
    %v1248 = vmul.f32 %v1247, 1.442695
    %v1249 = vpow.pop %v1248
    %v1250 = vadd.f32 %v1249, 1.0
    %v1251 = vrcp.pop %v1250
    %v1252 = vmul.f32 1.0, %v1251
    %v1253 = vtanh.pop %v1246
    %v1254 = vmul.f32 %v1252, %v1062
    %1256 = vrot.lane.b32.xlu0 %v1253, 32
    %v1257 = vpop.permute.xlu0 %1256
    %v1259 = vmul.f32 %v1252, %v1257
    %1261 = vrot.lane.b32.xlu0 %v1259, 32
    %v1262 = vpop.permute.xlu0 %1261
    %v1264 = vadd.f32 %v1254, %v1262
    %v1265 = vtanh.pop %v1264
    %1267 = vrot.lane.b32.xlu0 %v1265, 32
    %v1268 = vpop.permute.xlu0 %1267
    %v1270 = vmul.f32 %v1252, %v1268
    %1272 = vrot.lane.b32.xlu0 %v1270, 64
    %v1273 = vpop.permute.xlu0 %1272
    %v1274 = vsel %vm161, %v1273, 0
    %1276 = vmatprep.subr.mxu0 0.0
    %1277 = vmatpush1.msra.mxu0 0.0
    %1278 = vmatprep.subr.mxu0 0.0
    %1279 = vmatpush1.msra.mxu0 0.0
    %1280 = vmatprep.subr.mxu0 0.0
    %1281 = vmatpush1.msra.mxu0 0.0
    %1282 = vmatprep.subr.mxu0 0.0
    %1283 = vmatpush1.msra.mxu0 0.0
    %1284 = vmatprep.subr.mxu0 0.0
    %1285 = vmatpush1.msra.mxu0 0.0
    %1286 = vmatprep.subr.mxu0 0.0
    %1287 = vmatpush1.msra.mxu0 0.0
    %1288 = vmatprep.subr.mxu0 0.0
    %1289 = vmatpush1.msra.mxu0 0.0
    %1290 = vmatprep.subr.mxu0 0.0
    %1291 = vmatpush1.msra.mxu0 0.0
    %1292 = vmatprep.subr.mxu0 0.0
    %1293 = vmatpush1.msra.mxu0 0.0
    %1294 = vmatprep.subr.mxu0 0.0
    %1295 = vmatpush1.msra.mxu0 0.0
    %1296 = vmatprep.subr.mxu0 0.0
    %1297 = vmatpush1.msra.mxu0 0.0
    %1298 = vmatprep.subr.mxu0 0.0
    %1299 = vmatpush1.msra.mxu0 0.0
    %1300 = vmatprep.subr.mxu0 0.0
    %1301 = vmatpush1.msra.mxu0 %v53
    %1302 = vmatprep.subr.mxu0 0.0
    %1303 = vmatpush1.msra.mxu0 %v52
    %1304 = vmatprep.subr.mxu0 0.0
    %1305 = vmatpush1.msra.mxu0 %v51
    %1306 = vmatprep.subr.mxu0 0.0
    %1307 = vmatpush1.msra.mxu0 %v50
    %1308 = vmatprep.subr.mxu0 0.0
    %1309 = vmatpush2.msra.mxu0 0.0
    %1310 = vmatprep.subr.mxu0 0.0
    %1311 = vmatpush2.msra.mxu0 0.0
    %1312 = vmatprep.subr.mxu0 0.0
    %1313 = vmatpush2.msra.mxu0 0.0
    %1314 = vmatprep.subr.mxu0 0.0
    %1315 = vmatpush2.msra.mxu0 0.0
    %1316 = vmatprep.subr.mxu0 0.0
    %1317 = vmatpush2.msra.mxu0 0.0
    %1318 = vmatprep.subr.mxu0 0.0
    %1319 = vmatpush2.msra.mxu0 0.0
    %1320 = vmatprep.subr.mxu0 0.0
    %1321 = vmatpush2.msra.mxu0 0.0
    %1322 = vmatprep.subr.mxu0 0.0
    %1323 = vmatpush2.msra.mxu0 0.0
    %1324 = vmatprep.subr.mxu0 0.0
    %1325 = vmatpush2.msra.mxu0 0.0
    %1326 = vmatprep.subr.mxu0 0.0
    %1327 = vmatpush2.msra.mxu0 0.0
    %1328 = vmatprep.subr.mxu0 0.0
    %1329 = vmatpush2.msra.mxu0 0.0
    %1330 = vmatprep.subr.mxu0 0.0
    %1331 = vmatpush2.msra.mxu0 0.0
    %1332 = vmatprep.subr.mxu0 0.0
    %1333 = vmatpush2.msra.mxu0 0.0
    %1334 = vmatprep.subr.mxu0 0.0
    %1335 = vmatpush2.msra.mxu0 0.0
    %1336 = vmatprep.subr.mxu0 0.0
    %1337 = vmatpush2.msra.mxu0 0.0
    %1338 = vmatprep.subr.mxu0 0.0
    %1339 = vmatpush2.msra.mxu0 0.0
    %1340 = vmatprep.mubr.f32.mxu0 0.0
    %1341 = vmatmul.mubr.f32.gmra.mxu0 %v1274
    %v1342 = vpop.f32.mrf.mxu0
    %v1343 = vadd.f32 0.0, %v1342
    %v1344 = vpop.f32.mrf.mxu0
    %1345 = vdwg.mxu0
    %v1346 = vadd.f32 %v131, %v1241
    %v1347 = vxor.u32 %v1346, 2147483648
    %v1348 = vmul.f32 %v1347, 1.442695
    %v1349 = vpow.pop %v1348
    %v1350 = vadd.f32 %v1349, 1.0
    %v1351 = vrcp.pop %v1350
    %v1352 = vmul.f32 1.0, %v1351
    %v1353 = vtanh.pop %v1346
    %v1354 = vmul.f32 %v1352, %v1162
    %1356 = vrot.lane.b32.xlu0 %v1353, 32
    %v1357 = vpop.permute.xlu0 %1356
    %v1359 = vmul.f32 %v1352, %v1357
    %1361 = vrot.lane.b32.xlu0 %v1359, 32
    %v1362 = vpop.permute.xlu0 %1361
    %v1364 = vadd.f32 %v1354, %v1362
    %v1365 = vtanh.pop %v1364
    %1367 = vrot.lane.b32.xlu0 %v1365, 32
    %v1368 = vpop.permute.xlu0 %1367
    %v1370 = vmul.f32 %v1352, %v1368
    %1372 = vrot.lane.b32.xlu0 %v1370, 64
    %v1373 = vpop.permute.xlu0 %1372
    %v1374 = vsel %vm161, %v1373, 0
    %1376 = vmatprep.subr.mxu0 0.0
    %1377 = vmatpush1.msra.mxu0 0.0
    %1378 = vmatprep.subr.mxu0 0.0
    %1379 = vmatpush1.msra.mxu0 0.0
    %1380 = vmatprep.subr.mxu0 0.0
    %1381 = vmatpush1.msra.mxu0 0.0
    %1382 = vmatprep.subr.mxu0 0.0
    %1383 = vmatpush1.msra.mxu0 0.0
    %1384 = vmatprep.subr.mxu0 0.0
    %1385 = vmatpush1.msra.mxu0 0.0
    %1386 = vmatprep.subr.mxu0 0.0
    %1387 = vmatpush1.msra.mxu0 0.0
    %1388 = vmatprep.subr.mxu0 0.0
    %1389 = vmatpush1.msra.mxu0 0.0
    %1390 = vmatprep.subr.mxu0 0.0
    %1391 = vmatpush1.msra.mxu0 0.0
    %1392 = vmatprep.subr.mxu0 0.0
    %1393 = vmatpush1.msra.mxu0 0.0
    %1394 = vmatprep.subr.mxu0 0.0
    %1395 = vmatpush1.msra.mxu0 0.0
    %1396 = vmatprep.subr.mxu0 0.0
    %1397 = vmatpush1.msra.mxu0 0.0
    %1398 = vmatprep.subr.mxu0 0.0
    %1399 = vmatpush1.msra.mxu0 0.0
    %1400 = vmatprep.subr.mxu0 %v49
    %1401 = vmatpush1.msra.mxu0 %v48
    %1402 = vmatprep.subr.mxu0 %v47
    %1403 = vmatpush1.msra.mxu0 %v46
    %1404 = vmatprep.subr.mxu0 %v45
    %1405 = vmatpush1.msra.mxu0 %v44
    %1406 = vmatprep.subr.mxu0 %v43
    %1407 = vmatpush1.msra.mxu0 %v42
    %1408 = vmatprep.subr.mxu0 0.0
    %1409 = vmatpush2.msra.mxu0 0.0
    %1410 = vmatprep.subr.mxu0 0.0
    %1411 = vmatpush2.msra.mxu0 0.0
    %1412 = vmatprep.subr.mxu0 0.0
    %1413 = vmatpush2.msra.mxu0 0.0
    %1414 = vmatprep.subr.mxu0 0.0
    %1415 = vmatpush2.msra.mxu0 0.0
    %1416 = vmatprep.subr.mxu0 0.0
    %1417 = vmatpush2.msra.mxu0 0.0
    %1418 = vmatprep.subr.mxu0 0.0
    %1419 = vmatpush2.msra.mxu0 0.0
    %1420 = vmatprep.subr.mxu0 0.0
    %1421 = vmatpush2.msra.mxu0 0.0
    %1422 = vmatprep.subr.mxu0 0.0
    %1423 = vmatpush2.msra.mxu0 0.0
    %1424 = vmatprep.subr.mxu0 0.0
    %1425 = vmatpush2.msra.mxu0 0.0
    %1426 = vmatprep.subr.mxu0 0.0
    %1427 = vmatpush2.msra.mxu0 0.0
    %1428 = vmatprep.subr.mxu0 0.0
    %1429 = vmatpush2.msra.mxu0 0.0
    %1430 = vmatprep.subr.mxu0 0.0
    %1431 = vmatpush2.msra.mxu0 0.0
    %1432 = vmatprep.subr.mxu0 0.0
    %1433 = vmatpush2.msra.mxu0 0.0
    %1434 = vmatprep.subr.mxu0 0.0
    %1435 = vmatpush2.msra.mxu0 0.0
    %1436 = vmatprep.subr.mxu0 0.0
    %1437 = vmatpush2.msra.mxu0 0.0
    %1438 = vmatprep.subr.mxu0 0.0
    %1439 = vmatpush2.msra.mxu0 0.0
    %1440 = vmatprep.mubr.f32.mxu0 0.0
    %1441 = vmatmul.mubr.f32.gmra.mxu0 %v1374
    %v1442 = vpop.f32.mrf.mxu0
    %v1443 = vadd.f32 0.0, %v1442
    %v1444 = vpop.f32.mrf.mxu0
    %v1445 = vadd.f32 0.0, %v1444
    %1446 = vdwg.mxu0
    %v1447 = vadd.f32 %v1445, %v1343
    %v1448 = vadd.f32 %v1447, %v59
    %v1449 = vxor.u32 %v1448, 2147483648
    %v1450 = vmul.f32 %v1449, 1.442695
    %v1451 = vpow.pop %v1450
    %v1452 = vadd.f32 %v1451, 1.0
    %v1453 = vrcp.pop %v1452
    %v1454 = vmul.f32 1.0, %v1453
    %v1455 = vtanh.pop %v1448
    %v1456 = vmul.f32 %v1454, %v1264
    %1458 = vrot.lane.b32.xlu0 %v1455, 32
    %v1459 = vpop.permute.xlu0 %1458
    %v1461 = vmul.f32 %v1454, %v1459
    %1463 = vrot.lane.b32.xlu0 %v1461, 32
    %v1464 = vpop.permute.xlu0 %1463
    %v1466 = vadd.f32 %v1456, %v1464
    %v1467 = vtanh.pop %v1466
    %1469 = vrot.lane.b32.xlu0 %v1467, 32
    %v1470 = vpop.permute.xlu0 %1469
    %v1472 = vmul.f32 %v1454, %v1470
    %1474 = vrot.lane.b32.xlu0 %v1472, 64
    %v1475 = vpop.permute.xlu0 %1474
    %v1476 = vsel %vm161, %v1475, 0
    %1478 = vmatprep.subr.mxu0 0.0
    %1479 = vmatpush1.msra.mxu0 0.0
    %1480 = vmatprep.subr.mxu0 0.0
    %1481 = vmatpush1.msra.mxu0 0.0
    %1482 = vmatprep.subr.mxu0 0.0
    %1483 = vmatpush1.msra.mxu0 0.0
    %1484 = vmatprep.subr.mxu0 0.0
    %1485 = vmatpush1.msra.mxu0 0.0
    %1486 = vmatprep.subr.mxu0 0.0
    %1487 = vmatpush1.msra.mxu0 0.0
    %1488 = vmatprep.subr.mxu0 0.0
    %1489 = vmatpush1.msra.mxu0 0.0
    %1490 = vmatprep.subr.mxu0 0.0
    %1491 = vmatpush1.msra.mxu0 0.0
    %1492 = vmatprep.subr.mxu0 0.0
    %1493 = vmatpush1.msra.mxu0 0.0
    %1494 = vmatprep.subr.mxu0 0.0
    %1495 = vmatpush1.msra.mxu0 0.0
    %1496 = vmatprep.subr.mxu0 0.0
    %1497 = vmatpush1.msra.mxu0 0.0
    %1498 = vmatprep.subr.mxu0 0.0
    %1499 = vmatpush1.msra.mxu0 0.0
    %1500 = vmatprep.subr.mxu0 0.0
    %1501 = vmatpush1.msra.mxu0 0.0
    %1502 = vmatprep.subr.mxu0 0.0
    %1503 = vmatpush1.msra.mxu0 %v53
    %1504 = vmatprep.subr.mxu0 0.0
    %1505 = vmatpush1.msra.mxu0 %v52
    %1506 = vmatprep.subr.mxu0 0.0
    %1507 = vmatpush1.msra.mxu0 %v51
    %1508 = vmatprep.subr.mxu0 0.0
    %1509 = vmatpush1.msra.mxu0 %v50
    %1510 = vmatprep.subr.mxu0 0.0
    %1511 = vmatpush2.msra.mxu0 0.0
    %1512 = vmatprep.subr.mxu0 0.0
    %1513 = vmatpush2.msra.mxu0 0.0
    %1514 = vmatprep.subr.mxu0 0.0
    %1515 = vmatpush2.msra.mxu0 0.0
    %1516 = vmatprep.subr.mxu0 0.0
    %1517 = vmatpush2.msra.mxu0 0.0
    %1518 = vmatprep.subr.mxu0 0.0
    %1519 = vmatpush2.msra.mxu0 0.0
    %1520 = vmatprep.subr.mxu0 0.0
    %1521 = vmatpush2.msra.mxu0 0.0
    %1522 = vmatprep.subr.mxu0 0.0
    %1523 = vmatpush2.msra.mxu0 0.0
    %1524 = vmatprep.subr.mxu0 0.0
    %1525 = vmatpush2.msra.mxu0 0.0
    %1526 = vmatprep.subr.mxu0 0.0
    %1527 = vmatpush2.msra.mxu0 0.0
    %1528 = vmatprep.subr.mxu0 0.0
    %1529 = vmatpush2.msra.mxu0 0.0
    %1530 = vmatprep.subr.mxu0 0.0
    %1531 = vmatpush2.msra.mxu0 0.0
    %1532 = vmatprep.subr.mxu0 0.0
    %1533 = vmatpush2.msra.mxu0 0.0
    %1534 = vmatprep.subr.mxu0 0.0
    %1535 = vmatpush2.msra.mxu0 0.0
    %1536 = vmatprep.subr.mxu0 0.0
    %1537 = vmatpush2.msra.mxu0 0.0
    %1538 = vmatprep.subr.mxu0 0.0
    %1539 = vmatpush2.msra.mxu0 0.0
    %1540 = vmatprep.subr.mxu0 0.0
    %1541 = vmatpush2.msra.mxu0 0.0
    %1542 = vmatprep.mubr.f32.mxu0 0.0
    %1543 = vmatmul.mubr.f32.gmra.mxu0 %v1476
    %v1544 = vpop.f32.mrf.mxu0
    %v1545 = vadd.f32 0.0, %v1544
    %v1546 = vpop.f32.mrf.mxu0
    %1547 = vdwg.mxu0
    %v1548 = vadd.f32 %v132, %v1443
    %v1549 = vxor.u32 %v1548, 2147483648
    %v1550 = vmul.f32 %v1549, 1.442695
    %v1551 = vpow.pop %v1550
    %v1552 = vadd.f32 %v1551, 1.0
    %v1553 = vrcp.pop %v1552
    %v1554 = vmul.f32 1.0, %v1553
    %v1555 = vtanh.pop %v1548
    %v1556 = vmul.f32 %v1554, %v1364
    %1558 = vrot.lane.b32.xlu0 %v1555, 32
    %v1559 = vpop.permute.xlu0 %1558
    %v1561 = vmul.f32 %v1554, %v1559
    %1563 = vrot.lane.b32.xlu0 %v1561, 32
    %v1564 = vpop.permute.xlu0 %1563
    %v1566 = vadd.f32 %v1556, %v1564
    %v1567 = vtanh.pop %v1566
    %1569 = vrot.lane.b32.xlu0 %v1567, 32
    %v1570 = vpop.permute.xlu0 %1569
    %v1572 = vmul.f32 %v1554, %v1570
    %1574 = vrot.lane.b32.xlu0 %v1572, 64
    %v1575 = vpop.permute.xlu0 %1574
    %v1576 = vsel %vm161, %v1575, 0
    %1578 = vmatprep.subr.mxu0 0.0
    %1579 = vmatpush1.msra.mxu0 0.0
    %1580 = vmatprep.subr.mxu0 0.0
    %1581 = vmatpush1.msra.mxu0 0.0
    %1582 = vmatprep.subr.mxu0 0.0
    %1583 = vmatpush1.msra.mxu0 0.0
    %1584 = vmatprep.subr.mxu0 0.0
    %1585 = vmatpush1.msra.mxu0 0.0
    %1586 = vmatprep.subr.mxu0 0.0
    %1587 = vmatpush1.msra.mxu0 0.0
    %1588 = vmatprep.subr.mxu0 0.0
    %1589 = vmatpush1.msra.mxu0 0.0
    %1590 = vmatprep.subr.mxu0 0.0
    %1591 = vmatpush1.msra.mxu0 0.0
    %1592 = vmatprep.subr.mxu0 0.0
    %1593 = vmatpush1.msra.mxu0 0.0
    %1594 = vmatprep.subr.mxu0 0.0
    %1595 = vmatpush1.msra.mxu0 0.0
    %1596 = vmatprep.subr.mxu0 0.0
    %1597 = vmatpush1.msra.mxu0 0.0
    %1598 = vmatprep.subr.mxu0 0.0
    %1599 = vmatpush1.msra.mxu0 0.0
    %1600 = vmatprep.subr.mxu0 0.0
    %1601 = vmatpush1.msra.mxu0 0.0
    %1602 = vmatprep.subr.mxu0 %v49
    %1603 = vmatpush1.msra.mxu0 %v48
    %1604 = vmatprep.subr.mxu0 %v47
    %1605 = vmatpush1.msra.mxu0 %v46
    %1606 = vmatprep.subr.mxu0 %v45
    %1607 = vmatpush1.msra.mxu0 %v44
    %1608 = vmatprep.subr.mxu0 %v43
    %1609 = vmatpush1.msra.mxu0 %v42
    %1610 = vmatprep.subr.mxu0 0.0
    %1611 = vmatpush2.msra.mxu0 0.0
    %1612 = vmatprep.subr.mxu0 0.0
    %1613 = vmatpush2.msra.mxu0 0.0
    %1614 = vmatprep.subr.mxu0 0.0
    %1615 = vmatpush2.msra.mxu0 0.0
    %1616 = vmatprep.subr.mxu0 0.0
    %1617 = vmatpush2.msra.mxu0 0.0
    %1618 = vmatprep.subr.mxu0 0.0
    %1619 = vmatpush2.msra.mxu0 0.0
    %1620 = vmatprep.subr.mxu0 0.0
    %1621 = vmatpush2.msra.mxu0 0.0
    %1622 = vmatprep.subr.mxu0 0.0
    %1623 = vmatpush2.msra.mxu0 0.0
    %1624 = vmatprep.subr.mxu0 0.0
    %1625 = vmatpush2.msra.mxu0 0.0
    %1626 = vmatprep.subr.mxu0 0.0
    %1627 = vmatpush2.msra.mxu0 0.0
    %1628 = vmatprep.subr.mxu0 0.0
    %1629 = vmatpush2.msra.mxu0 0.0
    %1630 = vmatprep.subr.mxu0 0.0
    %1631 = vmatpush2.msra.mxu0 0.0
    %1632 = vmatprep.subr.mxu0 0.0
    %1633 = vmatpush2.msra.mxu0 0.0
    %1634 = vmatprep.subr.mxu0 0.0
    %1635 = vmatpush2.msra.mxu0 0.0
    %1636 = vmatprep.subr.mxu0 0.0
    %1637 = vmatpush2.msra.mxu0 0.0
    %1638 = vmatprep.subr.mxu0 0.0
    %1639 = vmatpush2.msra.mxu0 0.0
    %1640 = vmatprep.subr.mxu0 0.0
    %1641 = vmatpush2.msra.mxu0 0.0
    %1642 = vmatprep.mubr.f32.mxu0 0.0
    %1643 = vmatmul.mubr.f32.gmra.mxu0 %v1576
    %v1644 = vpop.f32.mrf.mxu0
    %v1645 = vpop.f32.mrf.mxu0
    %v1646 = vadd.f32 0.0, %v1645
    %1647 = vdwg.mxu0
    %v1648 = vadd.f32 %v1646, %v1545
    %v1649 = vadd.f32 %v1648, %v59
    %v1650 = vxor.u32 %v1649, 2147483648
    %v1651 = vmul.f32 %v1650, 1.442695
    %v1652 = vpow.pop %v1651
    %v1653 = vadd.f32 %v1652, 1.0
    %v1654 = vrcp.pop %v1653
    %v1655 = vmul.f32 1.0, %v1654
    %v1656 = vtanh.pop %v1649
    %v1657 = vmul.f32 %v1655, %v1466
    %1659 = vrot.lane.b32.xlu0 %v1656, 32
    %v1660 = vpop.permute.xlu0 %1659
    %v1662 = vmul.f32 %v1655, %v1660
    %1664 = vrot.lane.b32.xlu0 %v1662, 32
    %v1665 = vpop.permute.xlu0 %1664
    %v1667 = vadd.f32 %v1657, %v1665
    %v1668 = vtanh.pop %v1667
    %1670 = vrot.lane.b32.xlu0 %v1668, 32
    %v1671 = vpop.permute.xlu0 %1670
    %v1673 = vmul.f32 %v1655, %v1671
    %v1674 = vld [vmem:[#allocation4 + $0x38] sm:$0xff]
    %v1675 = vld [vmem:[#allocation4 + $0x40] sm:$0xff]
    %v1676 = vld [vmem:[#allocation4 + $0x48] sm:$0xff]
    %v1677 = vld [vmem:[#allocation4 + $0x50] sm:$0xff]
    %v1678 = vld [vmem:[#allocation4 + $0x58] sm:$0x1]
    %v1679 = vlaneseq
    %v1680 = vshrl.u32 %v1679, 7
    %v1681 = vsub.s32 0, %v1680
    %v1682 = vrot.slane %v1678, %v1681
    %1684 = vrot.lane.b32.xlu0 %v1673, 64
    %v1685 = vpop.permute.xlu0 %1684
    %v1686 = vsel %vm161, %v1685, 0
    %1688 = vmatprep.subr.mxu0 0.0
    %1689 = vmatpush1.msra.mxu0 0.0
    %1690 = vmatprep.subr.mxu0 0.0
    %1691 = vmatpush1.msra.mxu0 0.0
    %1692 = vmatprep.subr.mxu0 0.0
    %1693 = vmatpush1.msra.mxu0 0.0
    %1694 = vmatprep.subr.mxu0 0.0
    %1695 = vmatpush1.msra.mxu0 0.0
    %1696 = vmatprep.subr.mxu0 0.0
    %1697 = vmatpush1.msra.mxu0 0.0
    %1698 = vmatprep.subr.mxu0 0.0
    %1699 = vmatpush1.msra.mxu0 0.0
    %1700 = vmatprep.subr.mxu0 0.0
    %1701 = vmatpush1.msra.mxu0 0.0
    %1702 = vmatprep.subr.mxu0 0.0
    %1703 = vmatpush1.msra.mxu0 0.0
    %1704 = vmatprep.subr.mxu0 0.0
    %1705 = vmatpush1.msra.mxu0 0.0
    %1706 = vmatprep.subr.mxu0 0.0
    %1707 = vmatpush1.msra.mxu0 0.0
    %1708 = vmatprep.subr.mxu0 0.0
    %1709 = vmatpush1.msra.mxu0 0.0
    %1710 = vmatprep.subr.mxu0 0.0
    %1711 = vmatpush1.msra.mxu0 0.0
    %1712 = vmatprep.subr.mxu0 0.0
    %1713 = vmatpush1.msra.mxu0 %v1677
    %1714 = vmatprep.subr.mxu0 0.0
    %1715 = vmatpush1.msra.mxu0 %v1676
    %1716 = vmatprep.subr.mxu0 0.0
    %1717 = vmatpush1.msra.mxu0 %v1675
    %1718 = vmatprep.subr.mxu0 0.0
    %1719 = vmatpush1.msra.mxu0 %v1674
    %1720 = vmatprep.subr.mxu0 0.0
    %1721 = vmatpush2.msra.mxu0 0.0
    %1722 = vmatprep.subr.mxu0 0.0
    %1723 = vmatpush2.msra.mxu0 0.0
    %1724 = vmatprep.subr.mxu0 0.0
    %1725 = vmatpush2.msra.mxu0 0.0
    %1726 = vmatprep.subr.mxu0 0.0
    %1727 = vmatpush2.msra.mxu0 0.0
    %1728 = vmatprep.subr.mxu0 0.0
    %1729 = vmatpush2.msra.mxu0 0.0
    %1730 = vmatprep.subr.mxu0 0.0
    %1731 = vmatpush2.msra.mxu0 0.0
    %1732 = vmatprep.subr.mxu0 0.0
    %1733 = vmatpush2.msra.mxu0 0.0
    %1734 = vmatprep.subr.mxu0 0.0
    %1735 = vmatpush2.msra.mxu0 0.0
    %1736 = vmatprep.subr.mxu0 0.0
    %1737 = vmatpush2.msra.mxu0 0.0
    %1738 = vmatprep.subr.mxu0 0.0
    %1739 = vmatpush2.msra.mxu0 0.0
    %1740 = vmatprep.subr.mxu0 0.0
    %1741 = vmatpush2.msra.mxu0 0.0
    %1742 = vmatprep.subr.mxu0 0.0
    %1743 = vmatpush2.msra.mxu0 0.0
    %1744 = vmatprep.subr.mxu0 0.0
    %1745 = vmatpush2.msra.mxu0 0.0
    %1746 = vmatprep.subr.mxu0 0.0
    %1747 = vmatpush2.msra.mxu0 0.0
    %1748 = vmatprep.subr.mxu0 0.0
    %1749 = vmatpush2.msra.mxu0 0.0
    %1750 = vmatprep.subr.mxu0 0.0
    %1751 = vmatpush2.msra.mxu0 0.0
    %1752 = vmatprep.mubr.f32.mxu0 0.0
    %1753 = vmatmul.mubr.f32.gmra.mxu0 %v1686
    %v1754 = vpop.f32.mrf.mxu0
    %v1755 = vadd.f32 %v1682, %v1754
    %v1756 = vpop.f32.mrf.mxu0
    %1757 = vdwg.mxu0
    %vm1758 = vcmask 1024
    %1759 = vst.msk [vmem:[%s3] sm:$0x3] %vm1758, %v1755
    // Predicated region
    $region22: #{tpu_custom_call.1} parent=1 // pred_check
      _
    $region23: #{tpu_custom_call.1} parent=1 // pred_check_branch
      %1761 = sbr.rel (0) target = $region25
    $region24: #{tpu_custom_call.1} parent=1 // pred_region
      _
    $region25: #{tpu_custom_call.1} parent=1 // pred_fallthru
      _
    // Predicated region
    $region26: #{tpu_custom_call.1} parent=1 // pred_check
      _
    $region27: #{tpu_custom_call.1} parent=1 // pred_check_branch
      %1763 = sbr.rel (0) target = $region29
    $region28: #{tpu_custom_call.1} parent=1 // pred_region
      _
    $region29: #{tpu_custom_call.1} parent=1 // pred_fallthru
      _
    %1764 = vsyncpa [#allocation3], 1
    %1765 = vsyncpa [#allocation5], 1

</llo_original>
